<compile_context>
chip_gen: v5e
topology: v5e:2x2
jax: 0.10.0
libtpu: 0.0.40
codegen_flags: <defaults>
</compile_context>

<pallas_src>
import functools

import jax
import jax.numpy as jnp
import numpy as np
from jax.experimental import pallas as pl
from jax.experimental.pallas import tpu as pltpu

NEG_INF = -1e30  # large-negative stand-in for -inf in masked_fill_


# ----------------------------------------------------------------------------
# Pallas kernel: one batch element per grid step, everything fused.
# ----------------------------------------------------------------------------
def decoder_block_kernel(
    x_ref, kv_ref, mask_ref,
    wqkv1_ref, wo1_ref, g1_ref, b1_ref,
    wq2_ref, wkv2_ref, wo2_ref, g2_ref, b2_ref,
    wf1_ref, bf1_ref, wf2_ref, bf2_ref, g3_ref, b3_ref,
    out_ref, *, n_splits,
):
    f32 = jnp.float32
    bf16 = jnp.bfloat16

    x = x_ref[0]                                    # (m, H) f32
    kv = kv_ref[0]                                  # (n, H) f32
    cross_mask = mask_ref[0].astype(f32) > 0.0      # (m, n) bool, True = masked out

    m, H = x.shape
    n = kv.shape[0]
    nh = n_splits
    dk = H // nh

    def layer_norm(v, g_ref, b_ref):
        mu = jnp.mean(v, axis=-1, keepdims=True)
        var = jnp.mean((v - mu) * (v - mu), axis=-1, keepdims=True)
        return (v - mu) * jax.lax.rsqrt(var + 1e-5) * g_ref[0] + b_ref[0]

    def to_heads(t2d):
        # (S, H) -> (nh, S, dk) bf16 ; head h = columns [h*dk : (h+1)*dk]
        S = t2d.shape[0]
        return jnp.transpose(t2d.reshape(S, nh, dk), (1, 0, 2)).astype(bf16)

    def mha(qh, kh, vh, wo_ref, mask2d):
        # qh: (nh, Sq, dk); kh/vh: (nh, Skv, dk); mask2d: (Sq, Skv) bool
        # 1/sqrt(dk) is already folded into the Q weights.
        s = jnp.einsum("hqd,hkd->hqk", qh, kh, preferred_element_type=f32)
        s = jnp.where(mask2d[None], NEG_INF, s)
        s = s - jnp.max(s, axis=-1, keepdims=True)
        p = jnp.exp(s)
        p = p * pl.reciprocal(jnp.sum(p, axis=-1, keepdims=True), approx=True)
        c = jnp.einsum("hqk,hkd->hqd", p.astype(bf16), vh, preferred_element_type=f32)
        sq = qh.shape[1]
        c = jnp.transpose(c, (1, 0, 2)).reshape(sq, H)          # head-concat
        return jnp.dot(c.astype(bf16), wo_ref[...], preferred_element_type=f32)

    # causal mask (upper triangular, diagonal=1) as a single iota compare
    causal = (jax.lax.broadcasted_iota(jnp.int32, (m, m), 1) >
              jax.lax.broadcasted_iota(jnp.int32, (m, m), 0))

    # --- masked self-attention + residual + LayerNorm -----------------------
    qkv1 = jnp.dot(x.astype(bf16), wqkv1_ref[...],
                   preferred_element_type=f32)                   # (m, 3H)
    a1 = mha(to_heads(qkv1[:, :H]),
             to_heads(qkv1[:, H:2 * H]),
             to_heads(qkv1[:, 2 * H:]),
             wo1_ref, causal)
    z = layer_norm(x + a1, g1_ref, b1_ref)

    # --- cross attention + residual + LayerNorm -----------------------------
    q2 = jnp.dot(z.astype(bf16), wq2_ref[...],
                 preferred_element_type=f32)                     # (m, H)
    kv2 = jnp.dot(kv.astype(bf16), wkv2_ref[...],
                  preferred_element_type=f32)                    # (n, 2H)
    a2 = mha(to_heads(q2),
             to_heads(kv2[:, :H]),
             to_heads(kv2[:, H:]),
             wo2_ref, cross_mask)
    z = layer_norm(z + a2, g2_ref, b2_ref)

    # --- feed-forward (Linear -> ReLU -> Linear) + residual + LayerNorm ------
    h1 = jnp.dot(z.astype(bf16), wf1_ref[...], preferred_element_type=f32) + bf1_ref[0]
    h1 = jnp.maximum(h1, 0.0)
    ff = jnp.dot(h1.astype(bf16), wf2_ref[...], preferred_element_type=f32) + bf2_ref[0]
    z = layer_norm(z + ff, g3_ref, b3_ref)

    out_ref[0] = z.astype(out_ref.dtype)


# ----------------------------------------------------------------------------
# Host-side weight packing: transpose to (in, out), fuse QKV (self-attn) / KV
# (cross-attn) into single full-width matrices, fold 1/sqrt(dk) into Q, cast bf16.
# ----------------------------------------------------------------------------
def _to_2d(v):
    return jnp.asarray(v, jnp.float32).reshape(1, -1)


def _pack_weights(params, n_splits, wdtype):
    H = params["wq1"].shape[0]
    dk = H // n_splits
    scale = 1.0 / float(dk) ** 0.5

    def t(name):                                   # torch (out, in) -> (in, out)
        return jnp.asarray(params[name], jnp.float32).T

    wqkv1 = jnp.concatenate([t("wq1") * scale, t("wk1"), t("wv1")],
                            axis=-1).astype(wdtype)             # (H, 3H)
    wo1 = t("wo1").astype(wdtype)                               # (H, H)
    wq2 = (t("wq2") * scale).astype(wdtype)                     # (H, H)
    wkv2 = jnp.concatenate([t("wk2"), t("wv2")],
                           axis=-1).astype(wdtype)              # (H, 2H)
    wo2 = t("wo2").astype(wdtype)                               # (H, H)
    wf1 = t("wf1").astype(wdtype)                               # (H, 4H)
    wf2 = t("wf2").astype(wdtype)                               # (4H, H)

    return [
        wqkv1, wo1, _to_2d(params["g1"]), _to_2d(params["b1"]),
        wq2, wkv2, wo2, _to_2d(params["g2"]), _to_2d(params["b2"]),
        wf1, _to_2d(params["bf1"]), wf2, _to_2d(params["bf2"]),
        _to_2d(params["g3"]), _to_2d(params["b3"]),
    ]


def _const_index_map(ndim):
    zero = (0,) * ndim
    return lambda b: zero


# ----------------------------------------------------------------------------
# Generation-aware VMEM budget
# ----------------------------------------------------------------------------
def _vmem_cap_bytes():
    try:
        capacity = int(pltpu.get_tpu_info().vmem_capacity_bytes)
    except Exception:
        capacity = 64 * 1024 * 1024   # conservative: v7x per-TC VMEM
    # leave >=12 MiB (or 20%) for pipeline buffers / compiler internal scratch / spill
    headroom = max(12 * 1024 * 1024, capacity // 5)
    return max(capacity - headroom, 24 * 1024 * 1024)


def _vmem_limit_bytes(m, n, H, nh, weights, single_buffer_weights):
    # double-buffered per-step blocks: x, out (f32 m*H), kv (f32 n*H), mask (int8 m*n)
    io_bytes = 2 * (4 * (2 * m * H + n * H) + 1 * m * n)
    w_bytes = sum(int(w.size) * w.dtype.itemsize for w in weights)
    if not single_buffer_weights:
        w_bytes *= 2                                    # default pipelining = 2 buffers
    smax = max(m, n)
    # projections + per-head q/k/v + scores/probs + context + FFN activation + residuals
    tmp_bytes = 4 * (3 * m * H + n * 2 * H + 3 * smax * H
                     + 3 * nh * m * smax + m * H + 4 * m * H + 6 * m * H)
    need = io_bytes + w_bytes + tmp_bytes
    return int(min(max(2 * need, 32 * 1024 * 1024), _vmem_cap_bytes()))


# ----------------------------------------------------------------------------
# Wrapper
# ----------------------------------------------------------------------------
def decoder_block(x, key_and_value, mask, params, *, n_splits,
                  weight_dtype=jnp.bfloat16):
    x = jnp.asarray(x, jnp.float32)
    kv = jnp.asarray(key_and_value, jnp.float32)
    B, m, H = x.shape
    _, n, _ = kv.shape
    assert H % n_splits == 0, "hidden_size must be divisible by n_splits"

    weights = _pack_weights(params, n_splits, weight_dtype)
    mask_i8 = (jnp.asarray(mask) != 0).astype(jnp.int8)   # 0/1 flags, 1 byte/elem DMA

    kernel = functools.partial(decoder_block_kernel, n_splits=n_splits)

    def call(single_buffer_weights):
        def wspec(shape):
            idx = _const_index_map(len(shape))
            if single_buffer_weights:
                # weights are grid-invariant -> one VMEM buffer is enough
                return pl.BlockSpec(shape, idx,
                                    pipeline_mode=pl.Buffered(buffer_count=1))
            return pl.BlockSpec(shape, idx)

        grid_spec = pltpu.PrefetchScalarGridSpec(
            num_scalar_prefetch=0,
            grid=(B,),                                     # batch is 'parallel': feeds
            in_specs=[                                     # both v7x TCs when B >= 2
                pl.BlockSpec((1, m, H), lambda b: (b, 0, 0)),   # x
                pl.BlockSpec((1, n, H), lambda b: (b, 0, 0)),   # key_and_value
                pl.BlockSpec((1, m, n), lambda b: (b, 0, 0)),   # mask (int8 0/1)
            ] + [wspec(w.shape) for w in weights],
            out_specs=pl.BlockSpec((1, m, H), lambda b: (b, 0, 0)),
        )
        return pl.pallas_call(
            kernel,
            out_shape=jax.ShapeDtypeStruct((B, m, H), jnp.float32),
            grid_spec=grid_spec,
            compiler_params=pltpu.CompilerParams(
                dimension_semantics=("parallel",),
                vmem_limit_bytes=_vmem_limit_bytes(m, n, H, n_splits, weights,
                                                   single_buffer_weights)),
        )(x, kv, mask_i8, *weights)

    # explicit capability check instead of a blind try/except on everything
    single_buf = hasattr(pl, "Buffered")
    try:
        z = call(single_buf)
    except Exception as e:  # noqa: BLE001 - filtered below, genuine errors re-raised
        if not single_buf:
            raise
        msg = str(e).lower()
        if ("buffer" not in msg) and ("pipeline" not in msg):
            raise
        # Buffered(1) not supported by this build's pipeliner: fall back to default
        # double-buffered weights, with the VMEM limit re-sized for 2x weight buffers.
        z = call(False)

    # Module returns (z, key_and_value, mask, prev); prev is None in this path.
    return z, key_and_value, mask, None


# ----------------------------------------------------------------------------
# Pure-JAX f32 reference (mirrors the PyTorch forward, eval-mode dropout)
# ----------------------------------------------------------------------------
def ref_decoder_block(x, kv, mask, params, *, n_splits):
    H = x.shape[-1]
    dk = H // n_splits

    def ln(v, g, b):
        mu = v.mean(-1, keepdims=True)
        var = ((v - mu) ** 2).mean(-1, keepdims=True)
        return (v - mu) / jnp.sqrt(var + 1e-5) * g + b

    def mh(q_in, k_in, v_in, wq, wk, wv, wo, mask_b):
        q = q_in @ wq.T
        k = k_in @ wk.T
        v = v_in @ wv.T
        outs = []
        for h in range(n_splits):
            sl = slice(h * dk, (h + 1) * dk)
            s = jnp.einsum("bqd,bkd->bqk", q[..., sl], k[..., sl])
            if mask_b is not None:
                s = jnp.where(mask_b, NEG_INF, s)
            p = jax.nn.softmax(s / (dk ** 0.5), axis=-1)
            outs.append(jnp.einsum("bqk,bkd->bqd", p, v[..., sl]))
        return jnp.concatenate(outs, -1) @ wo.T

    B, m, _ = x.shape
    causal = jnp.triu(jnp.ones((m, m), jnp.bool_), k=1)[None].repeat(B, 0)

    z = ln(x + mh(x, x, x, params["wq1"], params["wk1"], params["wv1"],
                  params["wo1"], causal), params["g1"], params["b1"])
    z = ln(z + mh(z, kv, kv, params["wq2"], params["wk2"], params["wv2"],
                  params["wo2"], mask > 0.0), params["g2"], params["b2"])
    h1 = jnp.maximum(z @ params["wf1"].T + params["bf1"], 0.0)
    ff = h1 @ params["wf2"].T + params["bf2"]
    return ln(z + ff, params["g3"], params["b3"])


# ----------------------------------------------------------------------------
if __name__ == "__main__":
    B, m, n, H, n_splits = 2, 8, 8, 32, 4

    key = jax.random.PRNGKey(0)
    keys = jax.random.split(key, 24)
    kit = iter(keys)

    def init_w(shape, scale=0.1):
        return scale * jax.random.normal(next(kit), shape, dtype=jnp.float32)

    params = dict(
        wq1=init_w((H, H)), wk1=init_w((H, H)), wv1=init_w((H, H)), wo1=init_w((H, H)),
        g1=1.0 + init_w((H,)), b1=init_w((H,)),
        wq2=init_w((H, H)), wk2=init_w((H, H)), wv2=init_w((H, H)), wo2=init_w((H, H)),
        g2=1.0 + init_w((H,)), b2=init_w((H,)),
        wf1=init_w((4 * H, H)), bf1=init_w((4 * H,)),
        wf2=init_w((H, 4 * H)), bf2=init_w((H,)),
        g3=1.0 + init_w((H,)), b3=init_w((H,)),
    )

    x = jax.random.normal(next(kit), (B, m, H), dtype=jnp.float32)
    key_and_value = jax.random.normal(next(kit), (B, n, H), dtype=jnp.float32)

    # cross-attention padding-style mask: batch 1 masks its last two kv positions
    mask_np = np.zeros((B, m, n), dtype=np.float32)
    mask_np[1, :, -2:] = 1.0
    mask = jnp.asarray(mask_np)

    z, _, _, _ = decoder_block(x, key_and_value, mask, params, n_splits=n_splits)
    z = jax.block_until_ready(z)

    z_ref = ref_decoder_block(x, key_and_value, mask, params, n_splits=n_splits)
    # kernel uses bf16 MXU inputs with f32 accumulation; reference is full f32
    np.testing.assert_allclose(np.asarray(z), np.asarray(z_ref),
                               rtol=5e-2, atol=5e-2)

    print("KERNEL_OK")
</pallas_src>

<mosaic_0001>
module attributes {stable_mosaic.version = 11 : i64} {
  func.func @decoder_block_kernel(%arg0: i32, %arg1: memref<1x8x32xf32, #tpu.memory_space<vmem>>, %arg2: memref<1x8x32xf32, #tpu.memory_space<vmem>>, %arg3: memref<1x8x8xi8, #tpu.memory_space<vmem>>, %arg4: memref<32x96xbf16, #tpu.memory_space<vmem>>, %arg5: memref<32x32xbf16, #tpu.memory_space<vmem>>, %arg6: memref<1x32xf32, #tpu.memory_space<vmem>>, %arg7: memref<1x32xf32, #tpu.memory_space<vmem>>, %arg8: memref<32x32xbf16, #tpu.memory_space<vmem>>, %arg9: memref<32x64xbf16, #tpu.memory_space<vmem>>, %arg10: memref<32x32xbf16, #tpu.memory_space<vmem>>, %arg11: memref<1x32xf32, #tpu.memory_space<vmem>>, %arg12: memref<1x32xf32, #tpu.memory_space<vmem>>, %arg13: memref<32x128xbf16, #tpu.memory_space<vmem>>, %arg14: memref<1x128xf32, #tpu.memory_space<vmem>>, %arg15: memref<128x32xbf16, #tpu.memory_space<vmem>>, %arg16: memref<1x32xf32, #tpu.memory_space<vmem>>, %arg17: memref<1x32xf32, #tpu.memory_space<vmem>>, %arg18: memref<1x32xf32, #tpu.memory_space<vmem>>, %arg19: memref<1x8x32xf32, #tpu.memory_space<vmem>>) attributes {dimension_semantics = [#tpu.dimension_semantics<parallel>], iteration_bounds = array<i64: 2>, scalar_prefetch = 0 : i64, scratch_operands = 0 : i64, tpu.core_type = #tpu.core_type<tc>, window_params = [{transform_indices = @transform_0, window_bounds = array<i64: 1, 8, 32>}, {transform_indices = @transform_1, window_bounds = array<i64: 1, 8, 32>}, {transform_indices = @transform_2, window_bounds = array<i64: 1, 8, 8>}, {pipeline_mode = #tpu.pipeline_mode<synchronous>, transform_indices = @transform_3, window_bounds = array<i64: 32, 96>}, {pipeline_mode = #tpu.pipeline_mode<synchronous>, transform_indices = @transform_4, window_bounds = array<i64: 32, 32>}, {pipeline_mode = #tpu.pipeline_mode<synchronous>, transform_indices = @transform_5, window_bounds = array<i64: 1, 32>}, {pipeline_mode = #tpu.pipeline_mode<synchronous>, transform_indices = @transform_6, window_bounds = array<i64: 1, 32>}, {pipeline_mode = #tpu.pipeline_mode<synchronous>, transform_indices = @transform_7, window_bounds = array<i64: 32, 32>}, {pipeline_mode = #tpu.pipeline_mode<synchronous>, transform_indices = @transform_8, window_bounds = array<i64: 32, 64>}, {pipeline_mode = #tpu.pipeline_mode<synchronous>, transform_indices = @transform_9, window_bounds = array<i64: 32, 32>}, {pipeline_mode = #tpu.pipeline_mode<synchronous>, transform_indices = @transform_10, window_bounds = array<i64: 1, 32>}, {pipeline_mode = #tpu.pipeline_mode<synchronous>, transform_indices = @transform_11, window_bounds = array<i64: 1, 32>}, {pipeline_mode = #tpu.pipeline_mode<synchronous>, transform_indices = @transform_12, window_bounds = array<i64: 32, 128>}, {pipeline_mode = #tpu.pipeline_mode<synchronous>, transform_indices = @transform_13, window_bounds = array<i64: 1, 128>}, {pipeline_mode = #tpu.pipeline_mode<synchronous>, transform_indices = @transform_14, window_bounds = array<i64: 128, 32>}, {pipeline_mode = #tpu.pipeline_mode<synchronous>, transform_indices = @transform_15, window_bounds = array<i64: 1, 32>}, {pipeline_mode = #tpu.pipeline_mode<synchronous>, transform_indices = @transform_16, window_bounds = array<i64: 1, 32>}, {pipeline_mode = #tpu.pipeline_mode<synchronous>, transform_indices = @transform_17, window_bounds = array<i64: 1, 32>}, {transform_indices = @transform_18, window_bounds = array<i64: 1, 8, 32>}]} {
    %c0 = arith.constant 0 : index
    %c0_0 = arith.constant 0 : index
    %c0_1 = arith.constant 0 : index
    %0 = vector.load %arg1[%c0, %c0_0, %c0_1] : memref<1x8x32xf32, #tpu.memory_space<vmem>>, vector<1x8x32xf32>
    %1 = vector.shape_cast %0 : vector<1x8x32xf32> to vector<8x32xf32>
    %c0_2 = arith.constant 0 : index
    %c0_3 = arith.constant 0 : index
    %c0_4 = arith.constant 0 : index
    %2 = vector.load %arg2[%c0_2, %c0_3, %c0_4] : memref<1x8x32xf32, #tpu.memory_space<vmem>>, vector<1x8x32xf32>
    %3 = vector.shape_cast %2 : vector<1x8x32xf32> to vector<8x32xf32>
    %c0_5 = arith.constant 0 : index
    %c0_6 = arith.constant 0 : index
    %c0_7 = arith.constant 0 : index
    %4 = vector.load %arg3[%c0_5, %c0_6, %c0_7] : memref<1x8x8xi8, #tpu.memory_space<vmem>>, vector<1x8x8xi8>
    %5 = vector.shape_cast %4 : vector<1x8x8xi8> to vector<8x8xi8>
    %6 = arith.sitofp %5 : vector<8x8xi8> to vector<8x8xf32>
    %cst = arith.constant 0.000000e+00 : f32
    %7 = vector.broadcast %cst : f32 to vector<8x8xf32>
    %8 = arith.cmpf ogt, %6, %7 : vector<8x8xf32>
    %9 = tpu.iota {dimensions = array<i32: 1>} : vector<8x8xi32>
    %10 = tpu.iota {dimensions = array<i32: 0>} : vector<8x8xi32>
    %11 = arith.cmpi sgt, %9, %10 : vector<8x8xi32>
    %12 = arith.truncf %1 : vector<8x32xf32> to vector<8x32xbf16>
    %c0_8 = arith.constant 0 : index
    %c0_9 = arith.constant 0 : index
    %13 = vector.load %arg4[%c0_8, %c0_9] : memref<32x96xbf16, #tpu.memory_space<vmem>>, vector<32x96xbf16>
    %cst_10 = arith.constant dense<0.000000e+00> : vector<8x96xf32>
    %14 = tpu.matmul %12, %13, %cst_10 {dimension_numbers = #tpu.dot_dimension_numbers<[1], [0], [0], [1], [0, 0, 1, 1], [], []>} : vector<8x32xbf16>, vector<32x96xbf16>, vector<8x96xf32> -> vector<8x96xf32>
    %15 = vector.extract_strided_slice %14 {offsets = [0, 0], sizes = [8, 32], strides = [1, 1]} : vector<8x96xf32> to vector<8x32xf32>
    %16 = vector.shape_cast %15 : vector<8x32xf32> to vector<8x4x8xf32>
    %17 = tpu.transpose %16, [1, 0, 2] : vector<8x4x8xf32> -> vector<4x8x8xf32>
    %18 = arith.truncf %17 : vector<4x8x8xf32> to vector<4x8x8xbf16>
    %19 = vector.extract_strided_slice %14 {offsets = [0, 32], sizes = [8, 32], strides = [1, 1]} : vector<8x96xf32> to vector<8x32xf32>
    %20 = vector.shape_cast %19 : vector<8x32xf32> to vector<8x4x8xf32>
    %21 = tpu.transpose %20, [1, 0, 2] : vector<8x4x8xf32> -> vector<4x8x8xf32>
    %22 = arith.truncf %21 : vector<4x8x8xf32> to vector<4x8x8xbf16>
    %23 = vector.extract_strided_slice %14 {offsets = [0, 64], sizes = [8, 32], strides = [1, 1]} : vector<8x96xf32> to vector<8x32xf32>
    %24 = vector.shape_cast %23 : vector<8x32xf32> to vector<8x4x8xf32>
    %25 = tpu.transpose %24, [1, 0, 2] : vector<8x4x8xf32> -> vector<4x8x8xf32>
    %26 = arith.truncf %25 : vector<4x8x8xf32> to vector<4x8x8xbf16>
    "tpu.trace_start"() <{level = 10 : i32, message = "hqd,hkd->hqk"}> : () -> ()
    %cst_11 = arith.constant dense<0.000000e+00> : vector<4x8x8xf32>
    %27 = tpu.matmul %18, %22, %cst_11 {dimension_numbers = #tpu.dot_dimension_numbers<[2], [2], [1], [1], [0, 0, 0, 1, 1, 1], [0], [0]>} : vector<4x8x8xbf16>, vector<4x8x8xbf16>, vector<4x8x8xf32> -> vector<4x8x8xf32>
    "tpu.trace_stop"() : () -> ()
    %28 = vector.shape_cast %11 : vector<8x8xi1> to vector<1x8x8xi1>
    %cst_12 = arith.constant -1.000000e+30 : f32
    %29 = vector.shape_cast %28 : vector<1x8x8xi1> to vector<1x8x8xi1>
    %30 = vector.broadcast %29 : vector<1x8x8xi1> to vector<4x8x8xi1>
    %31 = vector.broadcast %cst_12 : f32 to vector<4x8x8xf32>
    %32 = arith.select %30, %31, %27 : vector<4x8x8xi1>, vector<4x8x8xf32>
    %cst_13 = arith.constant dense<0xFF800000> : vector<4x8xf32>
    %33 = vector.multi_reduction <maximumf>, %32, %cst_13 [2] : vector<4x8x8xf32> to vector<4x8xf32>
    %34 = vector.shape_cast %33 : vector<4x8xf32> to vector<4x8x1xf32>
    %35 = vector.broadcast %34 : vector<4x8x1xf32> to vector<4x8x8xf32>
    %36 = arith.subf %32, %35 : vector<4x8x8xf32>
    %37 = math.exp %36 : vector<4x8x8xf32>
    %cst_14 = arith.constant dense<0.000000e+00> : vector<4x8xf32>
    %38 = vector.multi_reduction <add>, %37, %cst_14 [2] : vector<4x8x8xf32> to vector<4x8xf32>
    %39 = vector.shape_cast %38 : vector<4x8xf32> to vector<4x8x1xf32>
    %40 = tpu.reciprocal %39 {approx = true} : vector<4x8x1xf32> -> vector<4x8x1xf32>
    %41 = vector.broadcast %40 : vector<4x8x1xf32> to vector<4x8x8xf32>
    %42 = arith.mulf %37, %41 : vector<4x8x8xf32>
    %43 = arith.truncf %42 : vector<4x8x8xf32> to vector<4x8x8xbf16>
    "tpu.trace_start"() <{level = 10 : i32, message = "hqk,hkd->hqd"}> : () -> ()
    %cst_15 = arith.constant dense<0.000000e+00> : vector<4x8x8xf32>
    %44 = tpu.matmul %43, %26, %cst_15 {dimension_numbers = #tpu.dot_dimension_numbers<[2], [1], [1], [2], [0, 0, 0, 1, 1, 2], [0], [0]>} : vector<4x8x8xbf16>, vector<4x8x8xbf16>, vector<4x8x8xf32> -> vector<4x8x8xf32>
    "tpu.trace_stop"() : () -> ()
    %45 = tpu.transpose %44, [1, 0, 2] : vector<4x8x8xf32> -> vector<8x4x8xf32>
    %46 = vector.shape_cast %45 : vector<8x4x8xf32> to vector<8x32xf32>
    %47 = arith.truncf %46 : vector<8x32xf32> to vector<8x32xbf16>
    %c0_16 = arith.constant 0 : index
    %c0_17 = arith.constant 0 : index
    %48 = vector.load %arg5[%c0_16, %c0_17] : memref<32x32xbf16, #tpu.memory_space<vmem>>, vector<32x32xbf16>
    %cst_18 = arith.constant dense<0.000000e+00> : vector<8x32xf32>
    %49 = tpu.matmul %47, %48, %cst_18 {dimension_numbers = #tpu.dot_dimension_numbers<[1], [0], [0], [1], [0, 0, 1, 1], [], []>} : vector<8x32xbf16>, vector<32x32xbf16>, vector<8x32xf32> -> vector<8x32xf32>
    %50 = arith.addf %1, %49 : vector<8x32xf32>
    %cst_19 = arith.constant dense<0.000000e+00> : vector<8xf32>
    %51 = vector.multi_reduction <add>, %50, %cst_19 [1] : vector<8x32xf32> to vector<8xf32>
    %52 = vector.shape_cast %51 : vector<8xf32> to vector<8x1xf32>
    %cst_20 = arith.constant 3.200000e+01 : f32
    %53 = vector.broadcast %cst_20 : f32 to vector<8x1xf32>
    %54 = arith.divf %52, %53 : vector<8x1xf32>
    %55 = vector.broadcast %54 : vector<8x1xf32> to vector<8x32xf32>
    %56 = arith.subf %50, %55 : vector<8x32xf32>
    %57 = vector.broadcast %54 : vector<8x1xf32> to vector<8x32xf32>
    %58 = arith.subf %50, %57 : vector<8x32xf32>
    %59 = arith.mulf %56, %58 : vector<8x32xf32>
    %cst_21 = arith.constant dense<0.000000e+00> : vector<8xf32>
    %60 = vector.multi_reduction <add>, %59, %cst_21 [1] : vector<8x32xf32> to vector<8xf32>
    %61 = vector.shape_cast %60 : vector<8xf32> to vector<8x1xf32>
    %cst_22 = arith.constant 3.200000e+01 : f32
    %62 = vector.broadcast %cst_22 : f32 to vector<8x1xf32>
    %63 = arith.divf %61, %62 : vector<8x1xf32>
    %64 = vector.broadcast %54 : vector<8x1xf32> to vector<8x32xf32>
    %65 = arith.subf %50, %64 : vector<8x32xf32>
    %cst_23 = arith.constant 9.99999974E-6 : f32
    %66 = vector.broadcast %cst_23 : f32 to vector<8x1xf32>
    %67 = arith.addf %63, %66 : vector<8x1xf32>
    %68 = math.rsqrt %67 : vector<8x1xf32>
    %69 = vector.broadcast %68 : vector<8x1xf32> to vector<8x32xf32>
    %70 = arith.mulf %65, %69 : vector<8x32xf32>
    %c0_24 = arith.constant 0 : index
    %c0_25 = arith.constant 0 : index
    %71 = vector.load %arg6[%c0_24, %c0_25] : memref<1x32xf32, #tpu.memory_space<vmem>>, vector<1x32xf32>
    %72 = vector.shape_cast %71 : vector<1x32xf32> to vector<32xf32>
    %73 = vector.shape_cast %72 : vector<32xf32> to vector<1x32xf32>
    %74 = vector.broadcast %73 : vector<1x32xf32> to vector<8x32xf32>
    %75 = arith.mulf %70, %74 : vector<8x32xf32>
    %c0_26 = arith.constant 0 : index
    %c0_27 = arith.constant 0 : index
    %76 = vector.load %arg7[%c0_26, %c0_27] : memref<1x32xf32, #tpu.memory_space<vmem>>, vector<1x32xf32>
    %77 = vector.shape_cast %76 : vector<1x32xf32> to vector<32xf32>
    %78 = vector.shape_cast %77 : vector<32xf32> to vector<1x32xf32>
    %79 = vector.broadcast %78 : vector<1x32xf32> to vector<8x32xf32>
    %80 = arith.addf %75, %79 : vector<8x32xf32>
    %81 = arith.truncf %80 : vector<8x32xf32> to vector<8x32xbf16>
    %c0_28 = arith.constant 0 : index
    %c0_29 = arith.constant 0 : index
    %82 = vector.load %arg8[%c0_28, %c0_29] : memref<32x32xbf16, #tpu.memory_space<vmem>>, vector<32x32xbf16>
    %cst_30 = arith.constant dense<0.000000e+00> : vector<8x32xf32>
    %83 = tpu.matmul %81, %82, %cst_30 {dimension_numbers = #tpu.dot_dimension_numbers<[1], [0], [0], [1], [0, 0, 1, 1], [], []>} : vector<8x32xbf16>, vector<32x32xbf16>, vector<8x32xf32> -> vector<8x32xf32>
    %84 = arith.truncf %3 : vector<8x32xf32> to vector<8x32xbf16>
    %c0_31 = arith.constant 0 : index
    %c0_32 = arith.constant 0 : index
    %85 = vector.load %arg9[%c0_31, %c0_32] : memref<32x64xbf16, #tpu.memory_space<vmem>>, vector<32x64xbf16>
    %cst_33 = arith.constant dense<0.000000e+00> : vector<8x64xf32>
    %86 = tpu.matmul %84, %85, %cst_33 {dimension_numbers = #tpu.dot_dimension_numbers<[1], [0], [0], [1], [0, 0, 1, 1], [], []>} : vector<8x32xbf16>, vector<32x64xbf16>, vector<8x64xf32> -> vector<8x64xf32>
    %87 = vector.shape_cast %83 : vector<8x32xf32> to vector<8x4x8xf32>
    %88 = tpu.transpose %87, [1, 0, 2] : vector<8x4x8xf32> -> vector<4x8x8xf32>
    %89 = arith.truncf %88 : vector<4x8x8xf32> to vector<4x8x8xbf16>
    %90 = vector.extract_strided_slice %86 {offsets = [0, 0], sizes = [8, 32], strides = [1, 1]} : vector<8x64xf32> to vector<8x32xf32>
    %91 = vector.shape_cast %90 : vector<8x32xf32> to vector<8x4x8xf32>
    %92 = tpu.transpose %91, [1, 0, 2] : vector<8x4x8xf32> -> vector<4x8x8xf32>
    %93 = arith.truncf %92 : vector<4x8x8xf32> to vector<4x8x8xbf16>
    %94 = vector.extract_strided_slice %86 {offsets = [0, 32], sizes = [8, 32], strides = [1, 1]} : vector<8x64xf32> to vector<8x32xf32>
    %95 = vector.shape_cast %94 : vector<8x32xf32> to vector<8x4x8xf32>
    %96 = tpu.transpose %95, [1, 0, 2] : vector<8x4x8xf32> -> vector<4x8x8xf32>
    %97 = arith.truncf %96 : vector<4x8x8xf32> to vector<4x8x8xbf16>
    "tpu.trace_start"() <{level = 10 : i32, message = "hqd,hkd->hqk"}> : () -> ()
    %cst_34 = arith.constant dense<0.000000e+00> : vector<4x8x8xf32>
    %98 = tpu.matmul %89, %93, %cst_34 {dimension_numbers = #tpu.dot_dimension_numbers<[2], [2], [1], [1], [0, 0, 0, 1, 1, 1], [0], [0]>} : vector<4x8x8xbf16>, vector<4x8x8xbf16>, vector<4x8x8xf32> -> vector<4x8x8xf32>
    "tpu.trace_stop"() : () -> ()
    %99 = vector.shape_cast %8 : vector<8x8xi1> to vector<1x8x8xi1>
    %cst_35 = arith.constant -1.000000e+30 : f32
    %100 = vector.shape_cast %99 : vector<1x8x8xi1> to vector<1x8x8xi1>
    %101 = vector.broadcast %100 : vector<1x8x8xi1> to vector<4x8x8xi1>
    %102 = vector.broadcast %cst_35 : f32 to vector<4x8x8xf32>
    %103 = arith.select %101, %102, %98 : vector<4x8x8xi1>, vector<4x8x8xf32>
    %cst_36 = arith.constant dense<0xFF800000> : vector<4x8xf32>
    %104 = vector.multi_reduction <maximumf>, %103, %cst_36 [2] : vector<4x8x8xf32> to vector<4x8xf32>
    %105 = vector.shape_cast %104 : vector<4x8xf32> to vector<4x8x1xf32>
    %106 = vector.broadcast %105 : vector<4x8x1xf32> to vector<4x8x8xf32>
    %107 = arith.subf %103, %106 : vector<4x8x8xf32>
    %108 = math.exp %107 : vector<4x8x8xf32>
    %cst_37 = arith.constant dense<0.000000e+00> : vector<4x8xf32>
    %109 = vector.multi_reduction <add>, %108, %cst_37 [2] : vector<4x8x8xf32> to vector<4x8xf32>
    %110 = vector.shape_cast %109 : vector<4x8xf32> to vector<4x8x1xf32>
    %111 = tpu.reciprocal %110 {approx = true} : vector<4x8x1xf32> -> vector<4x8x1xf32>
    %112 = vector.broadcast %111 : vector<4x8x1xf32> to vector<4x8x8xf32>
    %113 = arith.mulf %108, %112 : vector<4x8x8xf32>
    %114 = arith.truncf %113 : vector<4x8x8xf32> to vector<4x8x8xbf16>
    "tpu.trace_start"() <{level = 10 : i32, message = "hqk,hkd->hqd"}> : () -> ()
    %cst_38 = arith.constant dense<0.000000e+00> : vector<4x8x8xf32>
    %115 = tpu.matmul %114, %97, %cst_38 {dimension_numbers = #tpu.dot_dimension_numbers<[2], [1], [1], [2], [0, 0, 0, 1, 1, 2], [0], [0]>} : vector<4x8x8xbf16>, vector<4x8x8xbf16>, vector<4x8x8xf32> -> vector<4x8x8xf32>
    "tpu.trace_stop"() : () -> ()
    %116 = tpu.transpose %115, [1, 0, 2] : vector<4x8x8xf32> -> vector<8x4x8xf32>
    %117 = vector.shape_cast %116 : vector<8x4x8xf32> to vector<8x32xf32>
    %118 = arith.truncf %117 : vector<8x32xf32> to vector<8x32xbf16>
    %c0_39 = arith.constant 0 : index
    %c0_40 = arith.constant 0 : index
    %119 = vector.load %arg10[%c0_39, %c0_40] : memref<32x32xbf16, #tpu.memory_space<vmem>>, vector<32x32xbf16>
    %cst_41 = arith.constant dense<0.000000e+00> : vector<8x32xf32>
    %120 = tpu.matmul %118, %119, %cst_41 {dimension_numbers = #tpu.dot_dimension_numbers<[1], [0], [0], [1], [0, 0, 1, 1], [], []>} : vector<8x32xbf16>, vector<32x32xbf16>, vector<8x32xf32> -> vector<8x32xf32>
    %121 = arith.addf %80, %120 : vector<8x32xf32>
    %cst_42 = arith.constant dense<0.000000e+00> : vector<8xf32>
    %122 = vector.multi_reduction <add>, %121, %cst_42 [1] : vector<8x32xf32> to vector<8xf32>
    %123 = vector.shape_cast %122 : vector<8xf32> to vector<8x1xf32>
    %cst_43 = arith.constant 3.200000e+01 : f32
    %124 = vector.broadcast %cst_43 : f32 to vector<8x1xf32>
    %125 = arith.divf %123, %124 : vector<8x1xf32>
    %126 = vector.broadcast %125 : vector<8x1xf32> to vector<8x32xf32>
    %127 = arith.subf %121, %126 : vector<8x32xf32>
    %128 = vector.broadcast %125 : vector<8x1xf32> to vector<8x32xf32>
    %129 = arith.subf %121, %128 : vector<8x32xf32>
    %130 = arith.mulf %127, %129 : vector<8x32xf32>
    %cst_44 = arith.constant dense<0.000000e+00> : vector<8xf32>
    %131 = vector.multi_reduction <add>, %130, %cst_44 [1] : vector<8x32xf32> to vector<8xf32>
    %132 = vector.shape_cast %131 : vector<8xf32> to vector<8x1xf32>
    %cst_45 = arith.constant 3.200000e+01 : f32
    %133 = vector.broadcast %cst_45 : f32 to vector<8x1xf32>
    %134 = arith.divf %132, %133 : vector<8x1xf32>
    %135 = vector.broadcast %125 : vector<8x1xf32> to vector<8x32xf32>
    %136 = arith.subf %121, %135 : vector<8x32xf32>
    %cst_46 = arith.constant 9.99999974E-6 : f32
    %137 = vector.broadcast %cst_46 : f32 to vector<8x1xf32>
    %138 = arith.addf %134, %137 : vector<8x1xf32>
    %139 = math.rsqrt %138 : vector<8x1xf32>
    %140 = vector.broadcast %139 : vector<8x1xf32> to vector<8x32xf32>
    %141 = arith.mulf %136, %140 : vector<8x32xf32>
    %c0_47 = arith.constant 0 : index
    %c0_48 = arith.constant 0 : index
    %142 = vector.load %arg11[%c0_47, %c0_48] : memref<1x32xf32, #tpu.memory_space<vmem>>, vector<1x32xf32>
    %143 = vector.shape_cast %142 : vector<1x32xf32> to vector<32xf32>
    %144 = vector.shape_cast %143 : vector<32xf32> to vector<1x32xf32>
    %145 = vector.broadcast %144 : vector<1x32xf32> to vector<8x32xf32>
    %146 = arith.mulf %141, %145 : vector<8x32xf32>
    %c0_49 = arith.constant 0 : index
    %c0_50 = arith.constant 0 : index
    %147 = vector.load %arg12[%c0_49, %c0_50] : memref<1x32xf32, #tpu.memory_space<vmem>>, vector<1x32xf32>
    %148 = vector.shape_cast %147 : vector<1x32xf32> to vector<32xf32>
    %149 = vector.shape_cast %148 : vector<32xf32> to vector<1x32xf32>
    %150 = vector.broadcast %149 : vector<1x32xf32> to vector<8x32xf32>
    %151 = arith.addf %146, %150 : vector<8x32xf32>
    %152 = arith.truncf %151 : vector<8x32xf32> to vector<8x32xbf16>
    %c0_51 = arith.constant 0 : index
    %c0_52 = arith.constant 0 : index
    %153 = vector.load %arg13[%c0_51, %c0_52] : memref<32x128xbf16, #tpu.memory_space<vmem>>, vector<32x128xbf16>
    %cst_53 = arith.constant dense<0.000000e+00> : vector<8x128xf32>
    %154 = tpu.matmul %152, %153, %cst_53 {dimension_numbers = #tpu.dot_dimension_numbers<[1], [0], [0], [1], [0, 0, 1, 1], [], []>} : vector<8x32xbf16>, vector<32x128xbf16>, vector<8x128xf32> -> vector<8x128xf32>
    %c0_54 = arith.constant 0 : index
    %c0_55 = arith.constant 0 : index
    %155 = vector.load %arg14[%c0_54, %c0_55] : memref<1x128xf32, #tpu.memory_space<vmem>>, vector<1x128xf32>
    %156 = vector.shape_cast %155 : vector<1x128xf32> to vector<128xf32>
    %157 = vector.shape_cast %156 : vector<128xf32> to vector<1x128xf32>
    %158 = vector.broadcast %157 : vector<1x128xf32> to vector<8x128xf32>
    %159 = arith.addf %154, %158 : vector<8x128xf32>
    %cst_56 = arith.constant 0.000000e+00 : f32
    %160 = vector.broadcast %cst_56 : f32 to vector<8x128xf32>
    %161 = arith.maximumf %159, %160 : vector<8x128xf32>
    %162 = arith.truncf %161 : vector<8x128xf32> to vector<8x128xbf16>
    %c0_57 = arith.constant 0 : index
    %c0_58 = arith.constant 0 : index
    %163 = vector.load %arg15[%c0_57, %c0_58] : memref<128x32xbf16, #tpu.memory_space<vmem>>, vector<128x32xbf16>
    %cst_59 = arith.constant dense<0.000000e+00> : vector<8x32xf32>
    %164 = tpu.matmul %162, %163, %cst_59 {dimension_numbers = #tpu.dot_dimension_numbers<[1], [0], [0], [1], [0, 0, 1, 1], [], []>} : vector<8x128xbf16>, vector<128x32xbf16>, vector<8x32xf32> -> vector<8x32xf32>
    %c0_60 = arith.constant 0 : index
    %c0_61 = arith.constant 0 : index
    %165 = vector.load %arg16[%c0_60, %c0_61] : memref<1x32xf32, #tpu.memory_space<vmem>>, vector<1x32xf32>
    %166 = vector.shape_cast %165 : vector<1x32xf32> to vector<32xf32>
    %167 = vector.shape_cast %166 : vector<32xf32> to vector<1x32xf32>
    %168 = vector.broadcast %167 : vector<1x32xf32> to vector<8x32xf32>
    %169 = arith.addf %164, %168 : vector<8x32xf32>
    %170 = arith.addf %151, %169 : vector<8x32xf32>
    %cst_62 = arith.constant dense<0.000000e+00> : vector<8xf32>
    %171 = vector.multi_reduction <add>, %170, %cst_62 [1] : vector<8x32xf32> to vector<8xf32>
    %172 = vector.shape_cast %171 : vector<8xf32> to vector<8x1xf32>
    %cst_63 = arith.constant 3.200000e+01 : f32
    %173 = vector.broadcast %cst_63 : f32 to vector<8x1xf32>
    %174 = arith.divf %172, %173 : vector<8x1xf32>
    %175 = vector.broadcast %174 : vector<8x1xf32> to vector<8x32xf32>
    %176 = arith.subf %170, %175 : vector<8x32xf32>
    %177 = vector.broadcast %174 : vector<8x1xf32> to vector<8x32xf32>
    %178 = arith.subf %170, %177 : vector<8x32xf32>
    %179 = arith.mulf %176, %178 : vector<8x32xf32>
    %cst_64 = arith.constant dense<0.000000e+00> : vector<8xf32>
    %180 = vector.multi_reduction <add>, %179, %cst_64 [1] : vector<8x32xf32> to vector<8xf32>
    %181 = vector.shape_cast %180 : vector<8xf32> to vector<8x1xf32>
    %cst_65 = arith.constant 3.200000e+01 : f32
    %182 = vector.broadcast %cst_65 : f32 to vector<8x1xf32>
    %183 = arith.divf %181, %182 : vector<8x1xf32>
    %184 = vector.broadcast %174 : vector<8x1xf32> to vector<8x32xf32>
    %185 = arith.subf %170, %184 : vector<8x32xf32>
    %cst_66 = arith.constant 9.99999974E-6 : f32
    %186 = vector.broadcast %cst_66 : f32 to vector<8x1xf32>
    %187 = arith.addf %183, %186 : vector<8x1xf32>
    %188 = math.rsqrt %187 : vector<8x1xf32>
    %189 = vector.broadcast %188 : vector<8x1xf32> to vector<8x32xf32>
    %190 = arith.mulf %185, %189 : vector<8x32xf32>
    %c0_67 = arith.constant 0 : index
    %c0_68 = arith.constant 0 : index
    %191 = vector.load %arg17[%c0_67, %c0_68] : memref<1x32xf32, #tpu.memory_space<vmem>>, vector<1x32xf32>
    %192 = vector.shape_cast %191 : vector<1x32xf32> to vector<32xf32>
    %193 = vector.shape_cast %192 : vector<32xf32> to vector<1x32xf32>
    %194 = vector.broadcast %193 : vector<1x32xf32> to vector<8x32xf32>
    %195 = arith.mulf %190, %194 : vector<8x32xf32>
    %c0_69 = arith.constant 0 : index
    %c0_70 = arith.constant 0 : index
    %196 = vector.load %arg18[%c0_69, %c0_70] : memref<1x32xf32, #tpu.memory_space<vmem>>, vector<1x32xf32>
    %197 = vector.shape_cast %196 : vector<1x32xf32> to vector<32xf32>
    %198 = vector.shape_cast %197 : vector<32xf32> to vector<1x32xf32>
    %199 = vector.broadcast %198 : vector<1x32xf32> to vector<8x32xf32>
    %200 = arith.addf %195, %199 : vector<8x32xf32>
    %c0_71 = arith.constant 0 : index
    %c0_72 = arith.constant 0 : index
    %c0_73 = arith.constant 0 : index
    %201 = vector.load %arg19[%c0_71, %c0_72, %c0_73] : memref<1x8x32xf32, #tpu.memory_space<vmem>>, vector<1x8x32xf32>
    %202 = vector.shape_cast %201 : vector<1x8x32xf32> to vector<8x32xf32>
    %203 = vector.shape_cast %200 : vector<8x32xf32> to vector<1x8x32xf32>
    tpu.vector_store %arg19[%c0_71, %c0_72, %c0_73], %203 {strides = array<i32>} : memref<1x8x32xf32, #tpu.memory_space<vmem>>, vector<1x8x32xf32>,
    return
  }
  func.func @transform_0(%arg0: i32) -> (i32, i32, i32) {
    %c0_i32 = arith.constant 0 : i32
    %c0_i32_0 = arith.constant 0 : i32
    %c0_i32_1 = arith.constant 0 : i32
    return %arg0, %c0_i32, %c0_i32_0 : i32, i32, i32
  }
  func.func @transform_1(%arg0: i32) -> (i32, i32, i32) {
    %c0_i32 = arith.constant 0 : i32
    %c0_i32_0 = arith.constant 0 : i32
    %c0_i32_1 = arith.constant 0 : i32
    return %arg0, %c0_i32, %c0_i32_0 : i32, i32, i32
  }
  func.func @transform_2(%arg0: i32) -> (i32, i32, i32) {
    %c0_i32 = arith.constant 0 : i32
    %c0_i32_0 = arith.constant 0 : i32
    %c0_i32_1 = arith.constant 0 : i32
    return %arg0, %c0_i32, %c0_i32_0 : i32, i32, i32
  }
  func.func @transform_3(%arg0: i32) -> (i32, i32) {
    %c0_i32 = arith.constant 0 : i32
    %c0_i32_0 = arith.constant 0 : i32
    %c0_i32_1 = arith.constant 0 : i32
    return %c0_i32, %c0_i32_0 : i32, i32
  }
  func.func @transform_4(%arg0: i32) -> (i32, i32) {
    %c0_i32 = arith.constant 0 : i32
    %c0_i32_0 = arith.constant 0 : i32
    %c0_i32_1 = arith.constant 0 : i32
    return %c0_i32, %c0_i32_0 : i32, i32
  }
  func.func @transform_5(%arg0: i32) -> (i32, i32) {
    %c0_i32 = arith.constant 0 : i32
    %c0_i32_0 = arith.constant 0 : i32
    %c0_i32_1 = arith.constant 0 : i32
    return %c0_i32, %c0_i32_0 : i32, i32
  }
  func.func @transform_6(%arg0: i32) -> (i32, i32) {
    %c0_i32 = arith.constant 0 : i32
    %c0_i32_0 = arith.constant 0 : i32
    %c0_i32_1 = arith.constant 0 : i32
    return %c0_i32, %c0_i32_0 : i32, i32
  }
  func.func @transform_7(%arg0: i32) -> (i32, i32) {
    %c0_i32 = arith.constant 0 : i32
    %c0_i32_0 = arith.constant 0 : i32
    %c0_i32_1 = arith.constant 0 : i32
    return %c0_i32, %c0_i32_0 : i32, i32
  }
  func.func @transform_8(%arg0: i32) -> (i32, i32) {
    %c0_i32 = arith.constant 0 : i32
    %c0_i32_0 = arith.constant 0 : i32
    %c0_i32_1 = arith.constant 0 : i32
    return %c0_i32, %c0_i32_0 : i32, i32
  }
  func.func @transform_9(%arg0: i32) -> (i32, i32) {
    %c0_i32 = arith.constant 0 : i32
    %c0_i32_0 = arith.constant 0 : i32
    %c0_i32_1 = arith.constant 0 : i32
    return %c0_i32, %c0_i32_0 : i32, i32
  }
  func.func @transform_10(%arg0: i32) -> (i32, i32) {
    %c0_i32 = arith.constant 0 : i32
    %c0_i32_0 = arith.constant 0 : i32
    %c0_i32_1 = arith.constant 0 : i32
    return %c0_i32, %c0_i32_0 : i32, i32
  }
  func.func @transform_11(%arg0: i32) -> (i32, i32) {
    %c0_i32 = arith.constant 0 : i32
    %c0_i32_0 = arith.constant 0 : i32
    %c0_i32_1 = arith.constant 0 : i32
    return %c0_i32, %c0_i32_0 : i32, i32
  }
  func.func @transform_12(%arg0: i32) -> (i32, i32) {
    %c0_i32 = arith.constant 0 : i32
    %c0_i32_0 = arith.constant 0 : i32
    %c0_i32_1 = arith.constant 0 : i32
    return %c0_i32, %c0_i32_0 : i32, i32
  }
  func.func @transform_13(%arg0: i32) -> (i32, i32) {
    %c0_i32 = arith.constant 0 : i32
    %c0_i32_0 = arith.constant 0 : i32
    %c0_i32_1 = arith.constant 0 : i32
    return %c0_i32, %c0_i32_0 : i32, i32
  }
  func.func @transform_14(%arg0: i32) -> (i32, i32) {
    %c0_i32 = arith.constant 0 : i32
    %c0_i32_0 = arith.constant 0 : i32
    %c0_i32_1 = arith.constant 0 : i32
    return %c0_i32, %c0_i32_0 : i32, i32
  }
  func.func @transform_15(%arg0: i32) -> (i32, i32) {
    %c0_i32 = arith.constant 0 : i32
    %c0_i32_0 = arith.constant 0 : i32
    %c0_i32_1 = arith.constant 0 : i32
    return %c0_i32, %c0_i32_0 : i32, i32
  }
  func.func @transform_16(%arg0: i32) -> (i32, i32) {
    %c0_i32 = arith.constant 0 : i32
    %c0_i32_0 = arith.constant 0 : i32
    %c0_i32_1 = arith.constant 0 : i32
    return %c0_i32, %c0_i32_0 : i32, i32
  }
  func.func @transform_17(%arg0: i32) -> (i32, i32) {
    %c0_i32 = arith.constant 0 : i32
    %c0_i32_0 = arith.constant 0 : i32
    %c0_i32_1 = arith.constant 0 : i32
    return %c0_i32, %c0_i32_0 : i32, i32
  }
  func.func @transform_18(%arg0: i32) -> (i32, i32, i32) {
    %c0_i32 = arith.constant 0 : i32
    %c0_i32_0 = arith.constant 0 : i32
    %c0_i32_1 = arith.constant 0 : i32
    return %arg0, %c0_i32, %c0_i32_0 : i32, i32, i32
  }
}

</mosaic_0001>

<llo_original>
// kernel: tpu_custom_call.1
$region0: #{tpu_custom_call.1}
  #allocation0 [shape = 'u32[]', space=smem, size = 0x4, offset = 0x4, fixed_abs, tag = 'smem constant byte address 0x4 - core index']
  #allocation1 [shape = 'u32[72,128]{1,0:T(1,128)}', space=vmem, size = 0x9000, scoped, tag = 'internal scratch']
  %s0 = inlined_call_operand.vmem [shape: f32[2,8,32], index: 0, kind: input, shape index: {}]
  %s1 = inlined_call_operand.vmem [shape: f32[2,8,32], index: 1, kind: input, shape index: {}]
  %s2 = inlined_call_operand.hbm [shape: s8[2,8,8], index: 2, kind: input, shape index: {}]
  %s3 = inlined_call_operand.vmem [shape: bf16[32,96], index: 3, kind: input, shape index: {}]
  %s4 = inlined_call_operand.vmem [shape: bf16[32,32], index: 4, kind: input, shape index: {}]
  %s5 = inlined_call_operand.vmem [shape: f32[1,32], index: 5, kind: input, shape index: {}]
  %s6 = inlined_call_operand.vmem [shape: f32[1,32], index: 6, kind: input, shape index: {}]
  %s7 = inlined_call_operand.vmem [shape: bf16[32,32], index: 7, kind: input, shape index: {}]
  %s8 = inlined_call_operand.hbm [shape: bf16[32,64], index: 8, kind: input, shape index: {}]
  %s9 = inlined_call_operand.hbm [shape: bf16[32,32], index: 9, kind: input, shape index: {}]
  %s10 = inlined_call_operand.vmem [shape: f32[1,32], index: 10, kind: input, shape index: {}]
  %s11 = inlined_call_operand.vmem [shape: f32[1,32], index: 11, kind: input, shape index: {}]
  %s12 = inlined_call_operand.hbm [shape: bf16[32,128], index: 12, kind: input, shape index: {}]
  %s13 = inlined_call_operand.vmem [shape: f32[1,128], index: 13, kind: input, shape index: {}]
  %s14 = inlined_call_operand.vmem [shape: bf16[128,32], index: 14, kind: input, shape index: {}]
  %s15 = inlined_call_operand.vmem [shape: f32[1,32], index: 15, kind: input, shape index: {}]
  %s16 = inlined_call_operand.vmem [shape: f32[1,32], index: 16, kind: input, shape index: {}]
  %s17 = inlined_call_operand.vmem [shape: f32[1,32], index: 17, kind: input, shape index: {}]
  %s18 = inlined_call_operand.hbm [shape: f32[2,8,32], index: 18, kind: output, shape index: {}]
  %s19 = sld [smem:[#allocation0]]
  $region121: #{tpu_custom_call.1} parent=0
    _
  %s21 = ssub.s32 1, %s19
  %s22 = scalar_select 0, %s21, %s19
  $region1: #{tpu_custom_call.1} parent=0
    #allocation2 [shape = 'u8[2048]{0}', space=vmem, size = 0x800, scoped, tag = 'input window, operand 2']
    #allocation3 [shape = 's32[2]{0}', space=sflag, size = 0x8, scoped, tag = 'scoped memory for tpu_custom_call.1']
    #allocation4 [shape = 's32[2]{0}', space=sflag, size = 0x8, scoped, tag = 'scoped memory for tpu_custom_call.1']
    #allocation5 [shape = 'u8[8192]{0}', space=vmem, size = 0x2000, scoped, tag = 'input window, operand 8, single buffered']
    #allocation6 [shape = 's32[1]{0}', space=sflag, size = 0x4, scoped, tag = 'scoped memory for tpu_custom_call.1']
    #allocation7 [shape = 'u8[8192]{0}', space=vmem, size = 0x2000, scoped, tag = 'input window, operand 9, single buffered']
    #allocation8 [shape = 'u8[8192]{0}', space=vmem, size = 0x2000, scoped, tag = 'input window, operand 12, single buffered']
    #allocation9 [shape = 's32[1]{0}', space=sflag, size = 0x4, scoped, tag = 'scoped memory for tpu_custom_call.1']
    #allocation10 [shape = 'u8[8192]{0}', space=vmem, size = 0x2000, scoped, tag = 'output window, operand 0']
    %23 = vsyncpa [#allocation3], 0
    %s24 = scalar_lea.sflag [#allocation3], 1
    %25 = vsyncpa %s24, 0
    %26 = vsyncpa [#allocation6], 0
    %27 = vsyncpa [#allocation9], 0
    %28 = vsyncpa [#allocation4], 0
    %s29 = scalar_lea.sflag [#allocation4], 1
    %30 = vsyncpa %s29, 0
    loop: start=0, step=1, limit=4
    $region2: #{tpu_custom_call.1} parent=1 // loop_pre_header
      _
    $region3: #{tpu_custom_call.1} parent=1 // loop_header
      %s32 = sphi 0, %s36
      %p33 = scmp.ge.s32.totalorder %s32, 4
      %s42 = sphi 0, %s44
      %s45 = sphi 0, %s42
      %s46 = sphi 0, %s45
      %s62 = sphi 0, %s46
      %s68 = sphi 0, %s70
      %s71 = sphi 0, %s68
      %s72 = sphi 0, %s71
      %s88 = sphi 0, %s72
      %s94 = sphi 0, %s96
      %s97 = sphi 0, %s94
      %s98 = sphi 0, %s97
      %s114 = sphi 0, %s98
      %s118 = sphi 0, %s118
      %s120 = sphi 0, %s118
      %s121 = sphi 0, %s120
      %s135 = sphi 0, %s121
      %s139 = sphi 0, %s139
      %s141 = sphi 0, %s139
      %s142 = sphi 0, %s141
      %s156 = sphi 0, %s142
      %s160 = sphi 0, %s160
      %s162 = sphi 0, %s160
      %s163 = sphi 0, %s162
      %s177 = sphi 0, %s163
      %s181 = sphi 0, %s181
      %s183 = sphi 0, %s181
      %s184 = sphi 0, %s183
      %s198 = sphi 0, %s184
      %s202 = sphi 0, %s202
      %s204 = sphi 0, %s202
      %s205 = sphi 0, %s204
      %s219 = sphi 0, %s205
      %s223 = sphi 0, %s223
      %s225 = sphi 0, %s223
      %s226 = sphi 0, %s225
      %s240 = sphi 0, %s226
      %s244 = sphi 0, %s244
      %s246 = sphi 0, %s244
      %s247 = sphi 0, %s246
      %s261 = sphi 0, %s247
      %s265 = sphi 0, %s265
      %s267 = sphi 0, %s265
      %s268 = sphi 0, %s267
      %s282 = sphi 0, %s268
      %s286 = sphi 0, %s286
      %s288 = sphi 0, %s286
      %s289 = sphi 0, %s288
      %s303 = sphi 0, %s289
      %s307 = sphi 0, %s307
      %s309 = sphi 0, %s307
      %s310 = sphi 0, %s309
      %s324 = sphi 0, %s310
      %s328 = sphi 0, %s328
      %s330 = sphi 0, %s328
      %s331 = sphi 0, %s330
      %s345 = sphi 0, %s331
      %s349 = sphi 0, %s349
      %s351 = sphi 0, %s349
      %s352 = sphi 0, %s351
      %s366 = sphi 0, %s352
      %s370 = sphi 0, %s370
      %s372 = sphi 0, %s370
      %s373 = sphi 0, %s372
      %s387 = sphi 0, %s373
      %s391 = sphi 0, %s391
      %s393 = sphi 0, %s391
      %s394 = sphi 0, %s393
      %s408 = sphi 0, %s394
      %s412 = sphi 0, %s412
      %s414 = sphi 0, %s412
      %s415 = sphi 0, %s414
      %s429 = sphi 0, %s415
      %s435 = sphi 0, %s437
      %s438 = sphi 0, %s435
      %s439 = sphi 0, %s438
      %s455 = sphi 0, %s439
    $region4: #{tpu_custom_call.1} parent=1 // loop_header_branch
      %35 = sbr.rel (%p33) target = $region8
    $region5: #{tpu_custom_call.1} parent=1 // loop_body
      %s37 = ssub.s32 %s32, 1
      %s38 = ssub.s32 %s32, 2
      %s39 = sadd.s32 %s32, 1
      %s40 = ssub.s32 %s32, %s39
      %p41 = scmp.eq.s32.totalorder %s40, 0
      %s43 = sadd.s32 %s42, 1
      %s44 = scalar_select %p41, %s42, %s43
      %p47 = pneg %p41
      %p48 = scmp.eq.s32.totalorder %s32, 1
      %p49 = por %p47, %p48
      %p50 = scmp.ne.s32.totalorder %s42, %s45
      %p51 = scmp.eq.s32.totalorder %s32, 0
      %p52 = por %p50, %p51
      %p53 = scmp.ne.s32.totalorder %s42, %s45
      %p54 = scmp.eq.s32.totalorder %s37, 1
      %p55 = por %p53, %p54
      %p56 = scmp.ne.s32.totalorder %s45, %s46
      %p57 = scmp.eq.s32.totalorder %s37, 0
      %p58 = por %p56, %p57
      %p59 = scmp.ne.s32.totalorder %s45, %s46
      %p60 = scmp.eq.s32.totalorder %s38, 1
      %p61 = por %p59, %p60
      %p63 = scmp.ne.s32.totalorder %s46, %s62
      %p64 = scmp.eq.s32.totalorder %s38, 0
      %p65 = por %p63, %p64
      %s66 = ssub.s32 %s32, %s39
      %p67 = scmp.eq.s32.totalorder %s66, 0
      %s69 = sadd.s32 %s68, 1
      %s70 = scalar_select %p67, %s68, %s69
      %p73 = pneg %p67
      %p74 = scmp.eq.s32.totalorder %s32, 1
      %p75 = por %p73, %p74
      %p76 = scmp.ne.s32.totalorder %s68, %s71
      %p77 = scmp.eq.s32.totalorder %s32, 0
      %p78 = por %p76, %p77
      %p79 = scmp.ne.s32.totalorder %s68, %s71
      %p80 = scmp.eq.s32.totalorder %s37, 1
      %p81 = por %p79, %p80
      %p82 = scmp.ne.s32.totalorder %s71, %s72
      %p83 = scmp.eq.s32.totalorder %s37, 0
      %p84 = por %p82, %p83
      %p85 = scmp.ne.s32.totalorder %s71, %s72
      %p86 = scmp.eq.s32.totalorder %s38, 1
      %p87 = por %p85, %p86
      %p89 = scmp.ne.s32.totalorder %s72, %s88
      %p90 = scmp.eq.s32.totalorder %s38, 0
      %p91 = por %p89, %p90
      %s92 = ssub.s32 %s32, %s39
      %p93 = scmp.eq.s32.totalorder %s92, 0
      %s95 = sadd.s32 %s94, 1
      %s96 = scalar_select %p93, %s94, %s95
      %p99 = pneg %p93
      %p100 = scmp.eq.s32.totalorder %s32, 1
      %p101 = por %p99, %p100
      %p102 = scmp.ne.s32.totalorder %s94, %s97
      %p103 = scmp.eq.s32.totalorder %s32, 0
      %p104 = por %p102, %p103
      %p105 = scmp.ne.s32.totalorder %s94, %s97
      %p106 = scmp.eq.s32.totalorder %s37, 1
      %p107 = por %p105, %p106
      %p108 = scmp.ne.s32.totalorder %s97, %s98
      %p109 = scmp.eq.s32.totalorder %s37, 0
      %p110 = por %p108, %p109
      %p111 = scmp.ne.s32.totalorder %s97, %s98
      %p112 = scmp.eq.s32.totalorder %s38, 1
      %p113 = por %p111, %p112
      %p115 = scmp.ne.s32.totalorder %s98, %s114
      %p116 = scmp.eq.s32.totalorder %s38, 0
      %p117 = por %p115, %p116
      %s119 = sadd.s32 %s118, 1
      %p122 = scmp.eq.s32.totalorder %s32, 1
      %p123 = scmp.ne.s32.totalorder %s118, %s120
      %p124 = scmp.eq.s32.totalorder %s32, 0
      %p125 = por %p123, %p124
      %p126 = scmp.ne.s32.totalorder %s118, %s120
      %p127 = scmp.eq.s32.totalorder %s37, 1
      %p128 = por %p126, %p127
      %p129 = scmp.ne.s32.totalorder %s120, %s121
      %p130 = scmp.eq.s32.totalorder %s37, 0
      %p131 = por %p129, %p130
      %p132 = scmp.ne.s32.totalorder %s120, %s121
      %p133 = scmp.eq.s32.totalorder %s38, 1
      %p134 = por %p132, %p133
      %p136 = scmp.ne.s32.totalorder %s121, %s135
      %p137 = scmp.eq.s32.totalorder %s38, 0
      %p138 = por %p136, %p137
      %s140 = sadd.s32 %s139, 1
      %p143 = scmp.eq.s32.totalorder %s32, 1
      %p144 = scmp.ne.s32.totalorder %s139, %s141
      %p145 = scmp.eq.s32.totalorder %s32, 0
      %p146 = por %p144, %p145
      %p147 = scmp.ne.s32.totalorder %s139, %s141
      %p148 = scmp.eq.s32.totalorder %s37, 1
      %p149 = por %p147, %p148
      %p150 = scmp.ne.s32.totalorder %s141, %s142
      %p151 = scmp.eq.s32.totalorder %s37, 0
      %p152 = por %p150, %p151
      %p153 = scmp.ne.s32.totalorder %s141, %s142
      %p154 = scmp.eq.s32.totalorder %s38, 1
      %p155 = por %p153, %p154
      %p157 = scmp.ne.s32.totalorder %s142, %s156
      %p158 = scmp.eq.s32.totalorder %s38, 0
      %p159 = por %p157, %p158
      %s161 = sadd.s32 %s160, 1
      %p164 = scmp.eq.s32.totalorder %s32, 1
      %p165 = scmp.ne.s32.totalorder %s160, %s162
      %p166 = scmp.eq.s32.totalorder %s32, 0
      %p167 = por %p165, %p166
      %p168 = scmp.ne.s32.totalorder %s160, %s162
      %p169 = scmp.eq.s32.totalorder %s37, 1
      %p170 = por %p168, %p169
      %p171 = scmp.ne.s32.totalorder %s162, %s163
      %p172 = scmp.eq.s32.totalorder %s37, 0
      %p173 = por %p171, %p172
      %p174 = scmp.ne.s32.totalorder %s162, %s163
      %p175 = scmp.eq.s32.totalorder %s38, 1
      %p176 = por %p174, %p175
      %p178 = scmp.ne.s32.totalorder %s163, %s177
      %p179 = scmp.eq.s32.totalorder %s38, 0
      %p180 = por %p178, %p179
      %s182 = sadd.s32 %s181, 1
      %p185 = scmp.eq.s32.totalorder %s32, 1
      %p186 = scmp.ne.s32.totalorder %s181, %s183
      %p187 = scmp.eq.s32.totalorder %s32, 0
      %p188 = por %p186, %p187
      %p189 = scmp.ne.s32.totalorder %s181, %s183
      %p190 = scmp.eq.s32.totalorder %s37, 1
      %p191 = por %p189, %p190
      %p192 = scmp.ne.s32.totalorder %s183, %s184
      %p193 = scmp.eq.s32.totalorder %s37, 0
      %p194 = por %p192, %p193
      %p195 = scmp.ne.s32.totalorder %s183, %s184
      %p196 = scmp.eq.s32.totalorder %s38, 1
      %p197 = por %p195, %p196
      %p199 = scmp.ne.s32.totalorder %s184, %s198
      %p200 = scmp.eq.s32.totalorder %s38, 0
      %p201 = por %p199, %p200
      %s203 = sadd.s32 %s202, 1
      %p206 = scmp.eq.s32.totalorder %s32, 1
      %p207 = scmp.ne.s32.totalorder %s202, %s204
      %p208 = scmp.eq.s32.totalorder %s32, 0
      %p209 = por %p207, %p208
      %p210 = scmp.ne.s32.totalorder %s202, %s204
      %p211 = scmp.eq.s32.totalorder %s37, 1
      %p212 = por %p210, %p211
      %p213 = scmp.ne.s32.totalorder %s204, %s205
      %p214 = scmp.eq.s32.totalorder %s37, 0
      %p215 = por %p213, %p214
      %p216 = scmp.ne.s32.totalorder %s204, %s205
      %p217 = scmp.eq.s32.totalorder %s38, 1
      %p218 = por %p216, %p217
      %p220 = scmp.ne.s32.totalorder %s205, %s219
      %p221 = scmp.eq.s32.totalorder %s38, 0
      %p222 = por %p220, %p221
      %s224 = sadd.s32 %s223, 1
      %p227 = scmp.eq.s32.totalorder %s32, 1
      %p228 = scmp.ne.s32.totalorder %s223, %s225
      %p229 = scmp.eq.s32.totalorder %s32, 0
      %p230 = por %p228, %p229
      %p231 = scmp.ne.s32.totalorder %s223, %s225
      %p232 = scmp.eq.s32.totalorder %s37, 1
      %p233 = por %p231, %p232
      %p234 = scmp.ne.s32.totalorder %s225, %s226
      %p235 = scmp.eq.s32.totalorder %s37, 0
      %p236 = por %p234, %p235
      %p237 = scmp.ne.s32.totalorder %s225, %s226
      %p238 = scmp.eq.s32.totalorder %s38, 1
      %p239 = por %p237, %p238
      %p241 = scmp.ne.s32.totalorder %s226, %s240
      %p242 = scmp.eq.s32.totalorder %s38, 0
      %p243 = por %p241, %p242
      %s245 = sadd.s32 %s244, 1
      %p248 = scmp.eq.s32.totalorder %s32, 1
      %p249 = scmp.ne.s32.totalorder %s244, %s246
      %p250 = scmp.eq.s32.totalorder %s32, 0
      %p251 = por %p249, %p250
      %p252 = scmp.ne.s32.totalorder %s244, %s246
      %p253 = scmp.eq.s32.totalorder %s37, 1
      %p254 = por %p252, %p253
      %p255 = scmp.ne.s32.totalorder %s246, %s247
      %p256 = scmp.eq.s32.totalorder %s37, 0
      %p257 = por %p255, %p256
      %p258 = scmp.ne.s32.totalorder %s246, %s247
      %p259 = scmp.eq.s32.totalorder %s38, 1
      %p260 = por %p258, %p259
      %p262 = scmp.ne.s32.totalorder %s247, %s261
      %p263 = scmp.eq.s32.totalorder %s38, 0
      %p264 = por %p262, %p263
      %s266 = sadd.s32 %s265, 1
      %p269 = scmp.eq.s32.totalorder %s32, 1
      %p270 = scmp.ne.s32.totalorder %s265, %s267
      %p271 = scmp.eq.s32.totalorder %s32, 0
      %p272 = por %p270, %p271
      %p273 = scmp.ne.s32.totalorder %s265, %s267
      %p274 = scmp.eq.s32.totalorder %s37, 1
      %p275 = por %p273, %p274
      %p276 = scmp.ne.s32.totalorder %s267, %s268
      %p277 = scmp.eq.s32.totalorder %s37, 0
      %p278 = por %p276, %p277
      %p279 = scmp.ne.s32.totalorder %s267, %s268
      %p280 = scmp.eq.s32.totalorder %s38, 1
      %p281 = por %p279, %p280
      %p283 = scmp.ne.s32.totalorder %s268, %s282
      %p284 = scmp.eq.s32.totalorder %s38, 0
      %p285 = por %p283, %p284
      %s287 = sadd.s32 %s286, 1
      %p290 = scmp.eq.s32.totalorder %s32, 1
      %p291 = scmp.ne.s32.totalorder %s286, %s288
      %p292 = scmp.eq.s32.totalorder %s32, 0
      %p293 = por %p291, %p292
      %p294 = scmp.ne.s32.totalorder %s286, %s288
      %p295 = scmp.eq.s32.totalorder %s37, 1
      %p296 = por %p294, %p295
      %p297 = scmp.ne.s32.totalorder %s288, %s289
      %p298 = scmp.eq.s32.totalorder %s37, 0
      %p299 = por %p297, %p298
      %p300 = scmp.ne.s32.totalorder %s288, %s289
      %p301 = scmp.eq.s32.totalorder %s38, 1
      %p302 = por %p300, %p301
      %p304 = scmp.ne.s32.totalorder %s289, %s303
      %p305 = scmp.eq.s32.totalorder %s38, 0
      %p306 = por %p304, %p305
      %s308 = sadd.s32 %s307, 1
      %p311 = scmp.eq.s32.totalorder %s32, 1
      %p312 = scmp.ne.s32.totalorder %s307, %s309
      %p313 = scmp.eq.s32.totalorder %s32, 0
      %p314 = por %p312, %p313
      %p315 = scmp.ne.s32.totalorder %s307, %s309
      %p316 = scmp.eq.s32.totalorder %s37, 1
      %p317 = por %p315, %p316
      %p318 = scmp.ne.s32.totalorder %s309, %s310
      %p319 = scmp.eq.s32.totalorder %s37, 0
      %p320 = por %p318, %p319
      %p321 = scmp.ne.s32.totalorder %s309, %s310
      %p322 = scmp.eq.s32.totalorder %s38, 1
      %p323 = por %p321, %p322
      %p325 = scmp.ne.s32.totalorder %s310, %s324
      %p326 = scmp.eq.s32.totalorder %s38, 0
      %p327 = por %p325, %p326
      %s329 = sadd.s32 %s328, 1
      %p332 = scmp.eq.s32.totalorder %s32, 1
      %p333 = scmp.ne.s32.totalorder %s328, %s330
      %p334 = scmp.eq.s32.totalorder %s32, 0
      %p335 = por %p333, %p334
      %p336 = scmp.ne.s32.totalorder %s328, %s330
      %p337 = scmp.eq.s32.totalorder %s37, 1
      %p338 = por %p336, %p337
      %p339 = scmp.ne.s32.totalorder %s330, %s331
      %p340 = scmp.eq.s32.totalorder %s37, 0
      %p341 = por %p339, %p340
      %p342 = scmp.ne.s32.totalorder %s330, %s331
      %p343 = scmp.eq.s32.totalorder %s38, 1
      %p344 = por %p342, %p343
      %p346 = scmp.ne.s32.totalorder %s331, %s345
      %p347 = scmp.eq.s32.totalorder %s38, 0
      %p348 = por %p346, %p347
      %s350 = sadd.s32 %s349, 1
      %p353 = scmp.eq.s32.totalorder %s32, 1
      %p354 = scmp.ne.s32.totalorder %s349, %s351
      %p355 = scmp.eq.s32.totalorder %s32, 0
      %p356 = por %p354, %p355
      %p357 = scmp.ne.s32.totalorder %s349, %s351
      %p358 = scmp.eq.s32.totalorder %s37, 1
      %p359 = por %p357, %p358
      %p360 = scmp.ne.s32.totalorder %s351, %s352
      %p361 = scmp.eq.s32.totalorder %s37, 0
      %p362 = por %p360, %p361
      %p363 = scmp.ne.s32.totalorder %s351, %s352
      %p364 = scmp.eq.s32.totalorder %s38, 1
      %p365 = por %p363, %p364
      %p367 = scmp.ne.s32.totalorder %s352, %s366
      %p368 = scmp.eq.s32.totalorder %s38, 0
      %p369 = por %p367, %p368
      %s371 = sadd.s32 %s370, 1
      %p374 = scmp.eq.s32.totalorder %s32, 1
      %p375 = scmp.ne.s32.totalorder %s370, %s372
      %p376 = scmp.eq.s32.totalorder %s32, 0
      %p377 = por %p375, %p376
      %p378 = scmp.ne.s32.totalorder %s370, %s372
      %p379 = scmp.eq.s32.totalorder %s37, 1
      %p380 = por %p378, %p379
      %p381 = scmp.ne.s32.totalorder %s372, %s373
      %p382 = scmp.eq.s32.totalorder %s37, 0
      %p383 = por %p381, %p382
      %p384 = scmp.ne.s32.totalorder %s372, %s373
      %p385 = scmp.eq.s32.totalorder %s38, 1
      %p386 = por %p384, %p385
      %p388 = scmp.ne.s32.totalorder %s373, %s387
      %p389 = scmp.eq.s32.totalorder %s38, 0
      %p390 = por %p388, %p389
      %s392 = sadd.s32 %s391, 1
      %p395 = scmp.eq.s32.totalorder %s32, 1
      %p396 = scmp.ne.s32.totalorder %s391, %s393
      %p397 = scmp.eq.s32.totalorder %s32, 0
      %p398 = por %p396, %p397
      %p399 = scmp.ne.s32.totalorder %s391, %s393
      %p400 = scmp.eq.s32.totalorder %s37, 1
      %p401 = por %p399, %p400
      %p402 = scmp.ne.s32.totalorder %s393, %s394
      %p403 = scmp.eq.s32.totalorder %s37, 0
      %p404 = por %p402, %p403
      %p405 = scmp.ne.s32.totalorder %s393, %s394
      %p406 = scmp.eq.s32.totalorder %s38, 1
      %p407 = por %p405, %p406
      %p409 = scmp.ne.s32.totalorder %s394, %s408
      %p410 = scmp.eq.s32.totalorder %s38, 0
      %p411 = por %p409, %p410
      %s413 = sadd.s32 %s412, 1
      %p416 = scmp.eq.s32.totalorder %s32, 1
      %p417 = scmp.ne.s32.totalorder %s412, %s414
      %p418 = scmp.eq.s32.totalorder %s32, 0
      %p419 = por %p417, %p418
      %p420 = scmp.ne.s32.totalorder %s412, %s414
      %p421 = scmp.eq.s32.totalorder %s37, 1
      %p422 = por %p420, %p421
      %p423 = scmp.ne.s32.totalorder %s414, %s415
      %p424 = scmp.eq.s32.totalorder %s37, 0
      %p425 = por %p423, %p424
      %p426 = scmp.ne.s32.totalorder %s414, %s415
      %p427 = scmp.eq.s32.totalorder %s38, 1
      %p428 = por %p426, %p427
      %p430 = scmp.ne.s32.totalorder %s415, %s429
      %p431 = scmp.eq.s32.totalorder %s38, 0
      %p432 = por %p430, %p431
      %s433 = ssub.s32 %s32, %s39
      %p434 = scmp.eq.s32.totalorder %s433, 0
      %s436 = sadd.s32 %s435, 1
      %s437 = scalar_select %p434, %s435, %s436
      %p440 = pneg %p434
      %p441 = scmp.eq.s32.totalorder %s32, 1
      %p442 = por %p440, %p441
      %p443 = scmp.ne.s32.totalorder %s435, %s438
      %p444 = scmp.eq.s32.totalorder %s32, 0
      %p445 = por %p443, %p444
      %p446 = scmp.ne.s32.totalorder %s435, %s438
      %p447 = scmp.eq.s32.totalorder %s37, 1
      %p448 = por %p446, %p447
      %p449 = scmp.ne.s32.totalorder %s438, %s439
      %p450 = scmp.eq.s32.totalorder %s37, 0
      %p451 = por %p449, %p450
      %p452 = scmp.ne.s32.totalorder %s438, %s439
      %p453 = scmp.eq.s32.totalorder %s38, 1
      %p454 = por %p452, %p453
      %p456 = scmp.ne.s32.totalorder %s439, %s455
      %p457 = scmp.eq.s32.totalorder %s38, 0
      %p458 = por %p456, %p457
      %p459 = scmp.le.s32.totalorder 1, %s32
      %p460 = scmp.lt.s32.totalorder %s32, 3
      %p461 = pnand %p459, %p460
      %p462 = pneg %p461
      // Predicated region
      $region9: #{tpu_custom_call.1} parent=5 // pred_check
        _
      $region10: #{tpu_custom_call.1} parent=5 // pred_check_branch
        %464 = sbr.rel (%p461) target = $region12
      $region11: #{tpu_custom_call.1} parent=5 // pred_region
        %s465 = ssub.s32 %s32, 1
        // Predicated region
        $region13: #{tpu_custom_call.1} parent=11 // pred_check
          %p466 = pneg %p131
        $region14: #{tpu_custom_call.1} parent=11 // pred_check_branch
          %468 = sbr.rel (%p466) target = $region16
        $region15: #{tpu_custom_call.1} parent=11 // pred_region
          _
        $region16: #{tpu_custom_call.1} parent=11 // pred_fallthru
          _
        // Predicated region
        $region17: #{tpu_custom_call.1} parent=11 // pred_check
          %p469 = pneg %p152
        $region18: #{tpu_custom_call.1} parent=11 // pred_check_branch
          %471 = sbr.rel (%p469) target = $region20
        $region19: #{tpu_custom_call.1} parent=11 // pred_region
          _
        $region20: #{tpu_custom_call.1} parent=11 // pred_fallthru
          _
        // Predicated region
        $region21: #{tpu_custom_call.1} parent=11 // pred_check
          %p472 = pneg %p173
        $region22: #{tpu_custom_call.1} parent=11 // pred_check_branch
          %474 = sbr.rel (%p472) target = $region24
        $region23: #{tpu_custom_call.1} parent=11 // pred_region
          _
        $region24: #{tpu_custom_call.1} parent=11 // pred_fallthru
          _
        // Predicated region
        $region25: #{tpu_custom_call.1} parent=11 // pred_check
          %p475 = pneg %p194
        $region26: #{tpu_custom_call.1} parent=11 // pred_check_branch
          %477 = sbr.rel (%p475) target = $region28
        $region27: #{tpu_custom_call.1} parent=11 // pred_region
          _
        $region28: #{tpu_custom_call.1} parent=11 // pred_fallthru
          _
        // Predicated region
        $region29: #{tpu_custom_call.1} parent=11 // pred_check
          %p478 = pneg %p215
        $region30: #{tpu_custom_call.1} parent=11 // pred_check_branch
          %480 = sbr.rel (%p478) target = $region32
        $region31: #{tpu_custom_call.1} parent=11 // pred_region
          _
        $region32: #{tpu_custom_call.1} parent=11 // pred_fallthru
          _
        // Predicated region
        $region33: #{tpu_custom_call.1} parent=11 // pred_check
          %p481 = pneg %p236
        $region34: #{tpu_custom_call.1} parent=11 // pred_check_branch
          %483 = sbr.rel (%p481) target = $region36
        $region35: #{tpu_custom_call.1} parent=11 // pred_region
          %485 = vsyncadd [#allocation6], 0
          %s486 = sshll.u32 %s8, 4
          %s487 = int_to_ptr.hbm [resolvable:$true] %s486
          %s488 = sshll.u32 [#allocation5], 4
          %s489 = int_to_ptr.vmem [resolvable:$true] %s488
          %494 = dma.hbm_to_vmem [thread:$0]  %s487, 256, %s489, [#allocation6], 64, 64, 4
        $region36: #{tpu_custom_call.1} parent=11 // pred_fallthru
          _
        // Predicated region
        $region37: #{tpu_custom_call.1} parent=11 // pred_check
          %p495 = pneg %p257
        $region38: #{tpu_custom_call.1} parent=11 // pred_check_branch
          %497 = sbr.rel (%p495) target = $region40
        $region39: #{tpu_custom_call.1} parent=11 // pred_region
          %499 = vsyncadd [#allocation6], 0
          %s500 = sshll.u32 %s9, 4
          %s501 = int_to_ptr.hbm [resolvable:$true] %s500
          %s502 = sshll.u32 [#allocation7], 4
          %s503 = int_to_ptr.vmem [resolvable:$true] %s502
          %508 = dma.hbm_to_vmem [thread:$0]  %s501, 256, %s503, [#allocation6], 64, 64, 4
        $region40: #{tpu_custom_call.1} parent=11 // pred_fallthru
          _
        // Predicated region
        $region41: #{tpu_custom_call.1} parent=11 // pred_check
          %p509 = pneg %p278
        $region42: #{tpu_custom_call.1} parent=11 // pred_check_branch
          %511 = sbr.rel (%p509) target = $region44
        $region43: #{tpu_custom_call.1} parent=11 // pred_region
          _
        $region44: #{tpu_custom_call.1} parent=11 // pred_fallthru
          _
        // Predicated region
        $region45: #{tpu_custom_call.1} parent=11 // pred_check
          %p512 = pneg %p299
        $region46: #{tpu_custom_call.1} parent=11 // pred_check_branch
          %514 = sbr.rel (%p512) target = $region48
        $region47: #{tpu_custom_call.1} parent=11 // pred_region
          _
        $region48: #{tpu_custom_call.1} parent=11 // pred_fallthru
          _
        // Predicated region
        $region49: #{tpu_custom_call.1} parent=11 // pred_check
          %p515 = pneg %p320
        $region50: #{tpu_custom_call.1} parent=11 // pred_check_branch
          %517 = sbr.rel (%p515) target = $region52
        $region51: #{tpu_custom_call.1} parent=11 // pred_region
          %519 = vsyncadd [#allocation9], 0
          %s520 = sshll.u32 %s12, 4
          %s521 = int_to_ptr.hbm [resolvable:$true] %s520
          %s522 = sshll.u32 [#allocation8], 4
          %s523 = int_to_ptr.vmem [resolvable:$true] %s522
          %528 = dma.hbm_to_vmem [thread:$0]  %s521, 256, %s523, [#allocation9], 64, 64, 4
        $region52: #{tpu_custom_call.1} parent=11 // pred_fallthru
          _
        // Predicated region
        $region53: #{tpu_custom_call.1} parent=11 // pred_check
          %p529 = pneg %p341
        $region54: #{tpu_custom_call.1} parent=11 // pred_check_branch
          %531 = sbr.rel (%p529) target = $region56
        $region55: #{tpu_custom_call.1} parent=11 // pred_region
          _
        $region56: #{tpu_custom_call.1} parent=11 // pred_fallthru
          _
        // Predicated region
        $region57: #{tpu_custom_call.1} parent=11 // pred_check
          %p532 = pneg %p362
        $region58: #{tpu_custom_call.1} parent=11 // pred_check_branch
          %534 = sbr.rel (%p532) target = $region60
        $region59: #{tpu_custom_call.1} parent=11 // pred_region
          _
        $region60: #{tpu_custom_call.1} parent=11 // pred_fallthru
          _
        // Predicated region
        $region61: #{tpu_custom_call.1} parent=11 // pred_check
          %p535 = pneg %p383
        $region62: #{tpu_custom_call.1} parent=11 // pred_check_branch
          %537 = sbr.rel (%p535) target = $region64
        $region63: #{tpu_custom_call.1} parent=11 // pred_region
          _
        $region64: #{tpu_custom_call.1} parent=11 // pred_fallthru
          _
        // Predicated region
        $region65: #{tpu_custom_call.1} parent=11 // pred_check
          %p538 = pneg %p404
        $region66: #{tpu_custom_call.1} parent=11 // pred_check_branch
          %540 = sbr.rel (%p538) target = $region68
        $region67: #{tpu_custom_call.1} parent=11 // pred_region
          _
        $region68: #{tpu_custom_call.1} parent=11 // pred_fallthru
          _
        // Predicated region
        $region69: #{tpu_custom_call.1} parent=11 // pred_check
          %p541 = pneg %p425
        $region70: #{tpu_custom_call.1} parent=11 // pred_check_branch
          %543 = sbr.rel (%p541) target = $region72
        $region71: #{tpu_custom_call.1} parent=11 // pred_region
          _
        $region72: #{tpu_custom_call.1} parent=11 // pred_fallthru
          _
      $region12: #{tpu_custom_call.1} parent=5 // pred_fallthru
        _
      %p544 = scmp.lt.s32.totalorder %s32, 2
      // Predicated region
      $region73: #{tpu_custom_call.1} parent=5 // pred_check
        %p545 = pneg %p544
      $region74: #{tpu_custom_call.1} parent=5 // pred_check_branch
        %547 = sbr.rel (%p545) target = $region76
      $region75: #{tpu_custom_call.1} parent=5 // pred_region
        // Predicated region
        $region77: #{tpu_custom_call.1} parent=75 // pred_check
          %p548 = pneg %p52
        $region78: #{tpu_custom_call.1} parent=75 // pred_check_branch
          %550 = sbr.rel (%p548) target = $region80
        $region79: #{tpu_custom_call.1} parent=75 // pred_region
          %p551 = scmp.lt.s32.totalorder %s32, 1
          %s552 = scalar_select %p551, %s32, 1
          %s553 = smul.addr %s552, 8
          %s554 = scalar_lea.vmem %s0, %s553
        $region80: #{tpu_custom_call.1} parent=75 // pred_fallthru
          _
        // Predicated region
        $region81: #{tpu_custom_call.1} parent=75 // pred_check
          %p555 = pneg %p78
        $region82: #{tpu_custom_call.1} parent=75 // pred_check_branch
          %557 = sbr.rel (%p555) target = $region84
        $region83: #{tpu_custom_call.1} parent=75 // pred_region
          %p558 = scmp.lt.s32.totalorder %s32, 1
          %s559 = scalar_select %p558, %s32, 1
          %s560 = smul.addr %s559, 8
          %s561 = scalar_lea.vmem %s1, %s560
        $region84: #{tpu_custom_call.1} parent=75 // pred_fallthru
          _
        // Predicated region
        $region85: #{tpu_custom_call.1} parent=75 // pred_check
          %p562 = pneg %p104
        $region86: #{tpu_custom_call.1} parent=75 // pred_check_branch
          %564 = sbr.rel (%p562) target = $region88
        $region87: #{tpu_custom_call.1} parent=75 // pred_region
          %s565 = sand.u32 %s94, 1
          %s566 = scalar_lea.sflag [#allocation3], %s565
          %s567 = sand.u32 %s94, 1
          %s568 = smul.addr %s567, 2
          %s569 = scalar_lea.vmem [#allocation2], %s568
          %571 = vsyncadd %s566, 0
          %s572 = smul.addr %s32, 2
          %s573 = scalar_lea.hbm %s2, %s572
          %s575 = sshll.u32 %s573, 4
          %s576 = int_to_ptr.hbm [resolvable:$true] %s575
          %s577 = sshll.u32 %s569, 4
          %s578 = int_to_ptr.vmem [resolvable:$true] %s577
          %580 = dma.hbm_to_vmem [thread:$0]  %s576, 32, %s578, %s566
        $region88: #{tpu_custom_call.1} parent=75 // pred_fallthru
          _
      $region76: #{tpu_custom_call.1} parent=5 // pred_fallthru
        _
      %p581 = scmp.le.s32.totalorder 1, %s32
      %p582 = scmp.lt.s32.totalorder %s32, 3
      %p583 = pnand %p581, %p582
      %p584 = pneg %p583
      // Predicated region
      $region89: #{tpu_custom_call.1} parent=5 // pred_check
        _
      $region90: #{tpu_custom_call.1} parent=5 // pred_check_branch
        %586 = sbr.rel (%p583) target = $region92
      $region91: #{tpu_custom_call.1} parent=5 // pred_region
        %s587 = ssub.s32 %s32, 1
        %s588 = sand.u32 %s97, 1
        %s589 = scalar_lea.sflag [#allocation3], %s588
        %s590 = sand.u32 %s97, 1
        %s591 = smul.addr %s590, 2
        %s592 = scalar_lea.vmem [#allocation2], %s591
        // Predicated region
        $region93: #{tpu_custom_call.1} parent=91 // pred_check
          %p593 = pneg %p110
        $region94: #{tpu_custom_call.1} parent=91 // pred_check_branch
          %595 = sbr.rel (%p593) target = $region96
        $region95: #{tpu_custom_call.1} parent=91 // pred_region
          %597 = dma.done %s589, 32
        $region96: #{tpu_custom_call.1} parent=91 // pred_fallthru
          _
        // Predicated region
        $region97: #{tpu_custom_call.1} parent=91 // pred_check
          %p598 = pneg %p236
        $region98: #{tpu_custom_call.1} parent=91 // pred_check_branch
          %600 = sbr.rel (%p598) target = $region100
        $region99: #{tpu_custom_call.1} parent=91 // pred_region
          %602 = dma.done [#allocation6], 256
        $region100: #{tpu_custom_call.1} parent=91 // pred_fallthru
          _
        // Predicated region
        $region101: #{tpu_custom_call.1} parent=91 // pred_check
          %p603 = pneg %p257
        $region102: #{tpu_custom_call.1} parent=91 // pred_check_branch
          %605 = sbr.rel (%p603) target = $region104
        $region103: #{tpu_custom_call.1} parent=91 // pred_region
          %607 = dma.done [#allocation6], 256
        $region104: #{tpu_custom_call.1} parent=91 // pred_fallthru
          _
        // Predicated region
        $region105: #{tpu_custom_call.1} parent=91 // pred_check
          %p608 = pneg %p320
        $region106: #{tpu_custom_call.1} parent=91 // pred_check_branch
          %610 = sbr.rel (%p608) target = $region108
        $region107: #{tpu_custom_call.1} parent=91 // pred_region
          %612 = dma.done [#allocation9], 256
        $region108: #{tpu_custom_call.1} parent=91 // pred_fallthru
          _
        %p613 = scmp.lt.s32.totalorder %s37, 1
        %s614 = scalar_select %p613, %s37, 1
        %s615 = smul.addr %s614, 8
        %s616 = scalar_lea.vmem %s0, %s615
        %p617 = pneg %p58
        %p618 = pneg %p55
        %p619 = scmp.lt.s32.totalorder %s37, 1
        %s620 = scalar_select %p619, %s37, 1
        %s621 = smul.addr %s620, 8
        %s622 = scalar_lea.vmem %s1, %s621
        %p623 = pneg %p84
        %p624 = pneg %p81
        %s625 = sand.u32 %s97, 1
        %s626 = scalar_lea.sflag [#allocation3], %s625
        %s627 = sand.u32 %s97, 1
        %s628 = smul.addr %s627, 2
        %s629 = scalar_lea.vmem [#allocation2], %s628
        %p630 = pneg %p110
        %p631 = pneg %p107
        %p632 = pneg %p131
        %p633 = pneg %p128
        %p634 = pneg %p152
        %p635 = pneg %p149
        %p636 = pneg %p173
        %p637 = pneg %p170
        %p638 = pneg %p194
        %p639 = pneg %p191
        %p640 = pneg %p215
        %p641 = pneg %p212
        %p642 = pneg %p236
        %p643 = pneg %p233
        %p644 = pneg %p257
        %p645 = pneg %p254
        %p646 = pneg %p278
        %p647 = pneg %p275
        %p648 = pneg %p299
        %p649 = pneg %p296
        %p650 = pneg %p320
        %p651 = pneg %p317
        %p652 = pneg %p341
        %p653 = pneg %p338
        %p654 = pneg %p362
        %p655 = pneg %p359
        %p656 = pneg %p383
        %p657 = pneg %p380
        %p658 = pneg %p404
        %p659 = pneg %p401
        %p660 = pneg %p425
        %p661 = pneg %p422
        %p662 = pneg %p451
        %p663 = pneg %p448
        %s664 = sand.u32 %s438, 1
        %s665 = scalar_lea.sflag [#allocation4], %s664
        %s666 = sand.u32 %s438, 1
        %s667 = smul.addr %s666, 8
        %s668 = scalar_lea.vmem [#allocation10], %s667
        %p669 = scmp.lt.s32.totalorder %s37, 1
        %s670 = scalar_select %p669, %s37, 1
        %s671 = smul.addr %s670, 8
        %s672 = scalar_lea.vmem %s0, %s671
        %p673 = scmp.lt.s32.totalorder %s37, 1
        %s674 = scalar_select %p673, %s37, 1
        %s675 = smul.addr %s674, 8
        %s676 = scalar_lea.vmem %s1, %s675
        %v678 = vld [vmem:[%s672] sm:$0xff]
        %v679 = vld [vmem:[%s676] sm:$0xff]
        %v680 = vld [vmem:[%s592] sm:$0x3]
        %v681 = vunpack.c.0.s8 %v680
        %v682 = vcvt.s32.f32 %v681
        %vm683 = vcmp.gt.f32.partialorder %v682, 0.0
        %v684 = vlaneseq
        %v685 = vand.u32 %v684, 127
        %v686 = vlaneseq
        %v687 = vshrl.u32 %v686, 7
        %vm688 = vcmp.gt.s32.totalorder %v685, %v687
        %v689 = vpack.c.bf16 %v678, %v678
        %v690 = vld [vmem:[%s3] sm:$0xf]
        %v691 = vld [vmem:[%s3 + $0x4] sm:$0xf]
        %v692 = vld [vmem:[%s3 + $0x8] sm:$0xf]
        %v693 = vld [vmem:[%s3 + $0xc] sm:$0xf]
        %v698 = vunpack.c.l.b16 %v690
        %v699 = vunpack.c.l.b16 %v691
        %v700 = vunpack.c.l.b16 %v692
        %v701 = vunpack.c.l.b16 %v693
        %v702 = vpack.c.b16 %v699, %v698
        %v703 = vpack.c.b16 %v701, %v700
        %vm706 = vcmask 261120
        %v708 = vsel %vm706, %v689, 0
        %710 = vmatpush.bf16.msra.mxu0 0
        %711 = vmatpush.bf16.msra.mxu0 0
        %712 = vmatpush.bf16.msra.mxu0 0
        %713 = vmatpush.bf16.msra.mxu0 0
        %714 = vmatpush.bf16.msra.mxu0 0
        %715 = vmatpush.bf16.msra.mxu0 0
        %716 = vmatpush.bf16.msra.mxu0 %v703
        %717 = vmatpush.bf16.msra.mxu0 %v702
        %718 = vmatmul.bf16.gmra.mxu0 %v708
        %v719 = vpop.f32.mrf.mxu0
        %v720 = vadd.f32 0.0, %v719
        %v721 = vpop.f32.mrf.mxu0
        %722 = vdwg.mxu0
        %724 = vrot.lane.b32.xlu0 %v720, 120
        %v725 = vpop.permute.xlu0 %724
        %727 = vrot.lane.b32.xlu0 %v720, 112
        %v728 = vpop.permute.xlu0 %727
        %730 = vrot.lane.b32.xlu0 %v720, 104
        %v731 = vpop.permute.xlu0 %730
        %v733 = vrot.slane %v728, 4
        %vm734 = vcmask 1047556
        %v735 = vsel %vm734, %v733, %v720
        %v736 = vrot.slane %v720, 4
        %v737 = vsel %vm734, %v728, %v736
        %v739 = vunpack.c.l.s4 1983009808
        %v740 = vunpack.c.0.s8 %v739
        %v741 = vperm.slane %v735, %v740
        %v743 = vunpack.c.l.s4 1983009808
        %v744 = vunpack.c.0.s8 %v743
        %v745 = vperm.slane %v737, %v744
        %v746 = vrot.slane %v731, 4
        %v747 = vsel %vm734, %v746, %v725
        %v748 = vrot.slane %v725, 4
        %v749 = vsel %vm734, %v731, %v748
        %v751 = vunpack.c.l.s4 1983009808
        %v752 = vunpack.c.0.s8 %v751
        %v753 = vperm.slane %v747, %v752
        %v755 = vunpack.c.l.s4 1983009808
        %v756 = vunpack.c.0.s8 %v755
        %v757 = vperm.slane %v749, %v756
        %v758 = vrot.slane %v753, 4
        %v759 = vsel %vm734, %v758, %v741
        %v760 = vrot.slane %v741, 4
        %v761 = vsel %vm734, %v753, %v760
        %v763 = vunpack.c.l.s4 1934713408
        %v764 = vunpack.c.0.s8 %v763
        %v765 = vperm.slane %v759, %v764
        %v767 = vunpack.c.l.s4 1934713408
        %v768 = vunpack.c.0.s8 %v767
        %v769 = vperm.slane %v761, %v768
        %v770 = vrot.slane %v757, 4
        %v771 = vsel %vm734, %v770, %v745
        %v772 = vrot.slane %v745, 4
        %v773 = vsel %vm734, %v757, %v772
        %v775 = vunpack.c.l.s4 1934713408
        %v776 = vunpack.c.0.s8 %v775
        %v777 = vperm.slane %v771, %v776
        %v779 = vunpack.c.l.s4 1934713408
        %v780 = vunpack.c.0.s8 %v779
        %v781 = vperm.slane %v773, %v780
        %v782 = vrot.slane %v765, 4
        %v783 = vsel %vm734, 0.0, %v782
        %v784 = vrot.slane %v769, 4
        %v785 = vsel %vm734, 0.0, %v784
        %v786 = vrot.slane %v777, 4
        %v787 = vsel %vm734, 0.0, %v786
        %v788 = vrot.slane %v781, 4
        %v789 = vsel %vm734, 0.0, %v788
        %v790 = vsel %vm734, %v784, %v765
        %v792 = vunpack.c.l.s4 1983009808
        %v793 = vunpack.c.0.s8 %v792
        %v794 = vperm.slane %v790, %v793
        %v795 = vrot.slane %v785, 4
        %v796 = vsel %vm734, %v795, %v783
        %v798 = vunpack.c.l.s4 1983009808
        %v799 = vunpack.c.0.s8 %v798
        %v800 = vperm.slane %v796, %v799
        %v801 = vsel %vm734, %v788, %v777
        %v803 = vunpack.c.l.s4 1983009808
        %v804 = vunpack.c.0.s8 %v803
        %v805 = vperm.slane %v801, %v804
        %v806 = vrot.slane %v789, 4
        %v807 = vsel %vm734, %v806, %v787
        %v809 = vunpack.c.l.s4 1983009808
        %v810 = vunpack.c.0.s8 %v809
        %v811 = vperm.slane %v807, %v810
        %v812 = vrot.slane %v800, 4
        %v813 = vsel %vm734, %v812, %v794
        %v814 = vrot.slane %v794, 4
        %v815 = vsel %vm734, %v800, %v814
        %v817 = vunpack.c.l.s4 1934713408
        %v818 = vunpack.c.0.s8 %v817
        %v819 = vperm.slane %v813, %v818
        %v821 = vunpack.c.l.s4 1934713408
        %v822 = vunpack.c.0.s8 %v821
        %v823 = vperm.slane %v815, %v822
        %v824 = vrot.slane %v811, 4
        %v825 = vsel %vm734, %v824, %v805
        %v826 = vrot.slane %v805, 4
        %v827 = vsel %vm734, %v811, %v826
        %v829 = vunpack.c.l.s4 1934713408
        %v830 = vunpack.c.0.s8 %v829
        %v831 = vperm.slane %v825, %v830
        %v833 = vunpack.c.l.s4 1934713408
        %v834 = vunpack.c.0.s8 %v833
        %v835 = vperm.slane %v827, %v834
        %v836 = vrot.slane %v831, 4
        %v837 = vsel %vm734, %v836, %v819
        %v838 = vrot.slane %v819, 4
        %v839 = vsel %vm734, %v831, %v838
        %v840 = vrot.slane %v835, 4
        %v841 = vsel %vm734, %v840, %v823
        %v842 = vrot.slane %v823, 4
        %v843 = vsel %vm734, %v835, %v842
        %v844 = vpack.c.bf16 %v837, %v837
        %v845 = vpack.c.bf16 %v839, %v839
        %v846 = vpack.c.bf16 %v841, %v841
        %v847 = vpack.c.bf16 %v843, %v843
        %848 = vrot.lane.b32.xlu0 %v720, 96
        %v849 = vpop.permute.xlu0 %848
        %850 = vrot.lane.b32.xlu0 %v725, 96
        %v851 = vpop.permute.xlu0 %850
        %852 = vrot.lane.b32.xlu0 %v728, 96
        %v853 = vpop.permute.xlu0 %852
        %854 = vrot.lane.b32.xlu0 %v731, 96
        %v855 = vpop.permute.xlu0 %854
        %v860 = vrot.slane %v853, 4
        %v861 = vsel %vm734, %v860, %v849
        %v862 = vrot.slane %v849, 4
        %v863 = vsel %vm734, %v853, %v862
        %v865 = vunpack.c.l.s4 1983009808
        %v866 = vunpack.c.0.s8 %v865
        %v867 = vperm.slane %v861, %v866
        %v869 = vunpack.c.l.s4 1983009808
        %v870 = vunpack.c.0.s8 %v869
        %v871 = vperm.slane %v863, %v870
        %v872 = vrot.slane %v855, 4
        %v873 = vsel %vm734, %v872, %v851
        %v874 = vrot.slane %v851, 4
        %v875 = vsel %vm734, %v855, %v874
        %v877 = vunpack.c.l.s4 1983009808
        %v878 = vunpack.c.0.s8 %v877
        %v879 = vperm.slane %v873, %v878
        %v881 = vunpack.c.l.s4 1983009808
        %v882 = vunpack.c.0.s8 %v881
        %v883 = vperm.slane %v875, %v882
        %v884 = vrot.slane %v879, 4
        %v885 = vsel %vm734, %v884, %v867
        %v886 = vrot.slane %v867, 4
        %v887 = vsel %vm734, %v879, %v886
        %v889 = vunpack.c.l.s4 1934713408
        %v890 = vunpack.c.0.s8 %v889
        %v891 = vperm.slane %v885, %v890
        %v893 = vunpack.c.l.s4 1934713408
        %v894 = vunpack.c.0.s8 %v893
        %v895 = vperm.slane %v887, %v894
        %v896 = vrot.slane %v883, 4
        %v897 = vsel %vm734, %v896, %v871
        %v898 = vrot.slane %v871, 4
        %v899 = vsel %vm734, %v883, %v898
        %v901 = vunpack.c.l.s4 1934713408
        %v902 = vunpack.c.0.s8 %v901
        %v903 = vperm.slane %v897, %v902
        %v905 = vunpack.c.l.s4 1934713408
        %v906 = vunpack.c.0.s8 %v905
        %v907 = vperm.slane %v899, %v906
        %v908 = vrot.slane %v891, 4
        %v909 = vsel %vm734, 0.0, %v908
        %v910 = vrot.slane %v895, 4
        %v911 = vsel %vm734, 0.0, %v910
        %v912 = vrot.slane %v903, 4
        %v913 = vsel %vm734, 0.0, %v912
        %v914 = vrot.slane %v907, 4
        %v915 = vsel %vm734, 0.0, %v914
        %v916 = vsel %vm734, %v910, %v891
        %v918 = vunpack.c.l.s4 1983009808
        %v919 = vunpack.c.0.s8 %v918
        %v920 = vperm.slane %v916, %v919
        %v921 = vrot.slane %v911, 4
        %v922 = vsel %vm734, %v921, %v909
        %v924 = vunpack.c.l.s4 1983009808
        %v925 = vunpack.c.0.s8 %v924
        %v926 = vperm.slane %v922, %v925
        %v927 = vsel %vm734, %v914, %v903
        %v929 = vunpack.c.l.s4 1983009808
        %v930 = vunpack.c.0.s8 %v929
        %v931 = vperm.slane %v927, %v930
        %v932 = vrot.slane %v915, 4
        %v933 = vsel %vm734, %v932, %v913
        %v935 = vunpack.c.l.s4 1983009808
        %v936 = vunpack.c.0.s8 %v935
        %v937 = vperm.slane %v933, %v936
        %v938 = vrot.slane %v926, 4
        %v939 = vsel %vm734, %v938, %v920
        %v940 = vrot.slane %v920, 4
        %v941 = vsel %vm734, %v926, %v940
        %v943 = vunpack.c.l.s4 1934713408
        %v944 = vunpack.c.0.s8 %v943
        %v945 = vperm.slane %v939, %v944
        %v947 = vunpack.c.l.s4 1934713408
        %v948 = vunpack.c.0.s8 %v947
        %v949 = vperm.slane %v941, %v948
        %v950 = vrot.slane %v937, 4
        %v951 = vsel %vm734, %v950, %v931
        %v952 = vrot.slane %v931, 4
        %v953 = vsel %vm734, %v937, %v952
        %v955 = vunpack.c.l.s4 1934713408
        %v956 = vunpack.c.0.s8 %v955
        %v957 = vperm.slane %v951, %v956
        %v959 = vunpack.c.l.s4 1934713408
        %v960 = vunpack.c.0.s8 %v959
        %v961 = vperm.slane %v953, %v960
        %v962 = vrot.slane %v957, 4
        %v963 = vsel %vm734, %v962, %v945
        %v964 = vrot.slane %v945, 4
        %v965 = vsel %vm734, %v957, %v964
        %v966 = vrot.slane %v961, 4
        %v967 = vsel %vm734, %v966, %v949
        %v968 = vrot.slane %v949, 4
        %v969 = vsel %vm734, %v961, %v968
        %v970 = vpack.c.bf16 %v963, %v963
        %v971 = vpack.c.bf16 %v965, %v965
        %v972 = vpack.c.bf16 %v967, %v967
        %v973 = vpack.c.bf16 %v969, %v969
        %974 = vrot.lane.b32.xlu0 %v720, 64
        %v975 = vpop.permute.xlu0 %974
        %976 = vrot.lane.b32.xlu0 %v725, 64
        %v977 = vpop.permute.xlu0 %976
        %978 = vrot.lane.b32.xlu0 %v728, 64
        %v979 = vpop.permute.xlu0 %978
        %980 = vrot.lane.b32.xlu0 %v731, 64
        %v981 = vpop.permute.xlu0 %980
        %v986 = vrot.slane %v979, 4
        %v987 = vsel %vm734, %v986, %v975
        %v988 = vrot.slane %v975, 4
        %v989 = vsel %vm734, %v979, %v988
        %v991 = vunpack.c.l.s4 1983009808
        %v992 = vunpack.c.0.s8 %v991
        %v993 = vperm.slane %v987, %v992
        %v995 = vunpack.c.l.s4 1983009808
        %v996 = vunpack.c.0.s8 %v995
        %v997 = vperm.slane %v989, %v996
        %v998 = vrot.slane %v981, 4
        %v999 = vsel %vm734, %v998, %v977
        %v1000 = vrot.slane %v977, 4
        %v1001 = vsel %vm734, %v981, %v1000
        %v1003 = vunpack.c.l.s4 1983009808
        %v1004 = vunpack.c.0.s8 %v1003
        %v1005 = vperm.slane %v999, %v1004
        %v1007 = vunpack.c.l.s4 1983009808
        %v1008 = vunpack.c.0.s8 %v1007
        %v1009 = vperm.slane %v1001, %v1008
        %v1010 = vrot.slane %v1005, 4
        %v1011 = vsel %vm734, %v1010, %v993
        %v1012 = vrot.slane %v993, 4
        %v1013 = vsel %vm734, %v1005, %v1012
        %v1015 = vunpack.c.l.s4 1934713408
        %v1016 = vunpack.c.0.s8 %v1015
        %v1017 = vperm.slane %v1011, %v1016
        %v1019 = vunpack.c.l.s4 1934713408
        %v1020 = vunpack.c.0.s8 %v1019
        %v1021 = vperm.slane %v1013, %v1020
        %v1022 = vrot.slane %v1009, 4
        %v1023 = vsel %vm734, %v1022, %v997
        %v1024 = vrot.slane %v997, 4
        %v1025 = vsel %vm734, %v1009, %v1024
        %v1027 = vunpack.c.l.s4 1934713408
        %v1028 = vunpack.c.0.s8 %v1027
        %v1029 = vperm.slane %v1023, %v1028
        %v1031 = vunpack.c.l.s4 1934713408
        %v1032 = vunpack.c.0.s8 %v1031
        %v1033 = vperm.slane %v1025, %v1032
        %v1034 = vrot.slane %v1017, 4
        %v1035 = vsel %vm734, 0.0, %v1034
        %v1036 = vrot.slane %v1021, 4
        %v1037 = vsel %vm734, 0.0, %v1036
        %v1038 = vrot.slane %v1029, 4
        %v1039 = vsel %vm734, 0.0, %v1038
        %v1040 = vrot.slane %v1033, 4
        %v1041 = vsel %vm734, 0.0, %v1040
        %v1042 = vsel %vm734, %v1036, %v1017
        %v1044 = vunpack.c.l.s4 1983009808
        %v1045 = vunpack.c.0.s8 %v1044
        %v1046 = vperm.slane %v1042, %v1045
        %v1047 = vrot.slane %v1037, 4
        %v1048 = vsel %vm734, %v1047, %v1035
        %v1050 = vunpack.c.l.s4 1983009808
        %v1051 = vunpack.c.0.s8 %v1050
        %v1052 = vperm.slane %v1048, %v1051
        %v1053 = vsel %vm734, %v1040, %v1029
        %v1055 = vunpack.c.l.s4 1983009808
        %v1056 = vunpack.c.0.s8 %v1055
        %v1057 = vperm.slane %v1053, %v1056
        %v1058 = vrot.slane %v1041, 4
        %v1059 = vsel %vm734, %v1058, %v1039
        %v1061 = vunpack.c.l.s4 1983009808
        %v1062 = vunpack.c.0.s8 %v1061
        %v1063 = vperm.slane %v1059, %v1062
        %v1064 = vrot.slane %v1052, 4
        %v1065 = vsel %vm734, %v1064, %v1046
        %v1066 = vrot.slane %v1046, 4
        %v1067 = vsel %vm734, %v1052, %v1066
        %v1069 = vunpack.c.l.s4 1934713408
        %v1070 = vunpack.c.0.s8 %v1069
        %v1071 = vperm.slane %v1065, %v1070
        %v1073 = vunpack.c.l.s4 1934713408
        %v1074 = vunpack.c.0.s8 %v1073
        %v1075 = vperm.slane %v1067, %v1074
        %v1076 = vrot.slane %v1063, 4
        %v1077 = vsel %vm734, %v1076, %v1057
        %v1078 = vrot.slane %v1057, 4
        %v1079 = vsel %vm734, %v1063, %v1078
        %v1081 = vunpack.c.l.s4 1934713408
        %v1082 = vunpack.c.0.s8 %v1081
        %v1083 = vperm.slane %v1077, %v1082
        %v1085 = vunpack.c.l.s4 1934713408
        %v1086 = vunpack.c.0.s8 %v1085
        %v1087 = vperm.slane %v1079, %v1086
        %v1088 = vrot.slane %v1083, 4
        %v1089 = vsel %vm734, %v1088, %v1071
        %v1090 = vrot.slane %v1071, 4
        %v1091 = vsel %vm734, %v1083, %v1090
        %v1092 = vrot.slane %v1087, 4
        %v1093 = vsel %vm734, %v1092, %v1075
        %v1094 = vrot.slane %v1075, 4
        %v1095 = vsel %vm734, %v1087, %v1094
        %v1096 = vpack.c.bf16 %v1089, %v1089
        %v1097 = vpack.c.bf16 %v1091, %v1091
        %v1098 = vpack.c.bf16 %v1093, %v1093
        %v1099 = vpack.c.bf16 %v1095, %v1095
        %vm1100 = vcmask 64512
        %v1102 = vsel %vm1100, %v844, 0
        %v1105 = vsel %vm1100, %v970, 0
        %1107 = vmatpush.bf16.xpose.msra.mxu0 0
        %1108 = vmatpush.bf16.xpose.msra.mxu0 0
        %1109 = vmatpush.bf16.xpose.msra.mxu0 0
        %1110 = vmatpush.bf16.xpose.msra.mxu0 0
        %1111 = vmatpush.bf16.xpose.msra.mxu0 0
        %1112 = vmatpush.bf16.xpose.msra.mxu0 0
        %1113 = vmatpush.bf16.xpose.msra.mxu0 0
        %1114 = vmatpush.bf16.xpose.msra.mxu0 %v1105
        %1115 = vmatmul.bf16.gmra.mxu0 %v1102
        %v1116 = vpop.f32.mrf.mxu0
        %v1117 = vadd.f32 0.0, %v1116
        %v1118 = vpop.f32.mrf.mxu0
        %1119 = vdwg.mxu0
        %v1121 = vsel %vm1100, %v845, 0
        %v1124 = vsel %vm1100, %v971, 0
        %1126 = vmatpush.bf16.xpose.msra.mxu0 0
        %1127 = vmatpush.bf16.xpose.msra.mxu0 0
        %1128 = vmatpush.bf16.xpose.msra.mxu0 0
        %1129 = vmatpush.bf16.xpose.msra.mxu0 0
        %1130 = vmatpush.bf16.xpose.msra.mxu0 0
        %1131 = vmatpush.bf16.xpose.msra.mxu0 0
        %1132 = vmatpush.bf16.xpose.msra.mxu0 0
        %1133 = vmatpush.bf16.xpose.msra.mxu0 %v1124
        %1134 = vmatmul.bf16.gmra.mxu0 %v1121
        %v1135 = vpop.f32.mrf.mxu0
        %v1136 = vadd.f32 0.0, %v1135
        %v1137 = vpop.f32.mrf.mxu0
        %1138 = vdwg.mxu0
        %v1140 = vsel %vm1100, %v846, 0
        %v1143 = vsel %vm1100, %v972, 0
        %1145 = vmatpush.bf16.xpose.msra.mxu0 0
        %1146 = vmatpush.bf16.xpose.msra.mxu0 0
        %1147 = vmatpush.bf16.xpose.msra.mxu0 0
        %1148 = vmatpush.bf16.xpose.msra.mxu0 0
        %1149 = vmatpush.bf16.xpose.msra.mxu0 0
        %1150 = vmatpush.bf16.xpose.msra.mxu0 0
        %1151 = vmatpush.bf16.xpose.msra.mxu0 0
        %1152 = vmatpush.bf16.xpose.msra.mxu0 %v1143
        %1153 = vmatmul.bf16.gmra.mxu0 %v1140
        %v1154 = vpop.f32.mrf.mxu0
        %v1155 = vadd.f32 0.0, %v1154
        %v1156 = vpop.f32.mrf.mxu0
        %1157 = vdwg.mxu0
        %v1159 = vsel %vm1100, %v847, 0
        %v1162 = vsel %vm1100, %v973, 0
        %1164 = vmatpush.bf16.xpose.msra.mxu0 0
        %1165 = vmatpush.bf16.xpose.msra.mxu0 0
        %1166 = vmatpush.bf16.xpose.msra.mxu0 0
        %1167 = vmatpush.bf16.xpose.msra.mxu0 0
        %1168 = vmatpush.bf16.xpose.msra.mxu0 0
        %1169 = vmatpush.bf16.xpose.msra.mxu0 0
        %1170 = vmatpush.bf16.xpose.msra.mxu0 0
        %1171 = vmatpush.bf16.xpose.msra.mxu0 %v1162
        %1172 = vmatmul.bf16.gmra.mxu0 %v1159
        %v1173 = vpop.f32.mrf.mxu0
        %v1174 = vadd.f32 0.0, %v1173
        %v1175 = vpop.f32.mrf.mxu0
        %1176 = vdwg.mxu0
        %v1177 = vsel %vm688, 1, 0
        %vm1178 = vcmp.eq.s32.totalorder %v1177, 1
        %v1179 = vsel %vm1178, -1e+30, %v1117
        %v1180 = vsel %vm1178, -1e+30, %v1136
        %v1181 = vsel %vm1178, -1e+30, %v1155
        %v1182 = vsel %vm1178, -1e+30, %v1174
        %v1183 = vsel %vm1100, %v1179, -inf
        %1184 = vmax.xlane.f32.xlu0 %v1183
        %v1185 = vpop.xlane.xlu0 %1184
        %v1186 = vsel %vm1100, %v1180, -inf
        %1187 = vmax.xlane.f32.xlu0 %v1186
        %v1188 = vpop.xlane.xlu0 %1187
        %v1189 = vsel %vm1100, %v1181, -inf
        %1190 = vmax.xlane.f32.xlu0 %v1189
        %v1191 = vpop.xlane.xlu0 %1190
        %v1192 = vsel %vm1100, %v1182, -inf
        %1193 = vmax.xlane.f32.xlu0 %v1192
        %v1194 = vpop.xlane.xlu0 %1193
        %v1195 = vsub.f32 %v1179, %v1185
        %v1196 = vsub.f32 %v1180, %v1188
        %v1197 = vsub.f32 %v1181, %v1191
        %v1198 = vsub.f32 %v1182, %v1194
        %v1199 = vmul.f32 %v1195, 1.442695
        %v1200 = vpow.pop %v1199
        %v1201 = vmul.f32 %v1196, 1.442695
        %v1202 = vpow.pop %v1201
        %v1203 = vmul.f32 %v1197, 1.442695
        %v1204 = vpow.pop %v1203
        %v1205 = vmul.f32 %v1198, 1.442695
        %v1206 = vpow.pop %v1205
        %v1207 = vsel %vm1100, %v1200, 0.0
        %1208 = vadd.xlane.f32.xlu0 %v1207
        %v1209 = vpop.xlane.xlu0 %1208
        %v1210 = vsel %vm1100, %v1202, 0.0
        %1211 = vadd.xlane.f32.xlu0 %v1210
        %v1212 = vpop.xlane.xlu0 %1211
        %v1213 = vsel %vm1100, %v1204, 0.0
        %1214 = vadd.xlane.f32.xlu0 %v1213
        %v1215 = vpop.xlane.xlu0 %1214
        %v1216 = vsel %vm1100, %v1206, 0.0
        %1217 = vadd.xlane.f32.xlu0 %v1216
        %v1218 = vpop.xlane.xlu0 %1217
        %v1219 = vrcp.pop %v1209
        %v1220 = vrcp.pop %v1212
        %v1221 = vrcp.pop %v1215
        %v1222 = vrcp.pop %v1218
        %v1223 = vmul.f32 %v1200, %v1219
        %v1224 = vmul.f32 %v1202, %v1220
        %v1225 = vmul.f32 %v1204, %v1221
        %v1226 = vmul.f32 %v1206, %v1222
        %v1227 = vpack.c.bf16 %v1223, %v1223
        %v1228 = vpack.c.bf16 %v1224, %v1224
        %v1229 = vpack.c.bf16 %v1225, %v1225
        %v1230 = vpack.c.bf16 %v1226, %v1226
        %v1232 = vsel %vm1100, %v1227, 0
        %vm1234 = vcmask 1043456
        %v1236 = vsel %vm1234, %v1096, 0
        %1238 = vmatpush.bf16.msra.mxu0 0
        %1239 = vmatpush.bf16.msra.mxu0 0
        %1240 = vmatpush.bf16.msra.mxu0 0
        %1241 = vmatpush.bf16.msra.mxu0 0
        %1242 = vmatpush.bf16.msra.mxu0 0
        %1243 = vmatpush.bf16.msra.mxu0 0
        %1244 = vmatpush.bf16.msra.mxu0 0
        %1245 = vmatpush.bf16.msra.mxu0 %v1236
        %1246 = vmatmul.bf16.gmra.mxu0 %v1232
        %v1247 = vpop.f32.mrf.mxu0
        %v1248 = vadd.f32 0.0, %v1247
        %v1249 = vpop.f32.mrf.mxu0
        %1250 = vdwg.mxu0
        %v1252 = vsel %vm1100, %v1228, 0
        %v1255 = vsel %vm1234, %v1097, 0
        %1257 = vmatpush.bf16.msra.mxu0 0
        %1258 = vmatpush.bf16.msra.mxu0 0
        %1259 = vmatpush.bf16.msra.mxu0 0
        %1260 = vmatpush.bf16.msra.mxu0 0
        %1261 = vmatpush.bf16.msra.mxu0 0
        %1262 = vmatpush.bf16.msra.mxu0 0
        %1263 = vmatpush.bf16.msra.mxu0 0
        %1264 = vmatpush.bf16.msra.mxu0 %v1255
        %1265 = vmatmul.bf16.gmra.mxu0 %v1252
        %v1266 = vpop.f32.mrf.mxu0
        %v1267 = vadd.f32 0.0, %v1266
        %v1268 = vpop.f32.mrf.mxu0
        %1269 = vdwg.mxu0
        %v1271 = vsel %vm1100, %v1229, 0
        %v1274 = vsel %vm1234, %v1098, 0
        %1276 = vmatpush.bf16.msra.mxu0 0
        %1277 = vmatpush.bf16.msra.mxu0 0
        %1278 = vmatpush.bf16.msra.mxu0 0
        %1279 = vmatpush.bf16.msra.mxu0 0
        %1280 = vmatpush.bf16.msra.mxu0 0
        %1281 = vmatpush.bf16.msra.mxu0 0
        %1282 = vmatpush.bf16.msra.mxu0 0
        %1283 = vmatpush.bf16.msra.mxu0 %v1274
        %1284 = vmatmul.bf16.gmra.mxu0 %v1271
        %v1285 = vpop.f32.mrf.mxu0
        %v1286 = vadd.f32 0.0, %v1285
        %v1287 = vpop.f32.mrf.mxu0
        %1288 = vdwg.mxu0
        %v1290 = vsel %vm1100, %v1230, 0
        %v1293 = vsel %vm1234, %v1099, 0
        %1295 = vmatpush.bf16.msra.mxu0 0
        %1296 = vmatpush.bf16.msra.mxu0 0
        %1297 = vmatpush.bf16.msra.mxu0 0
        %1298 = vmatpush.bf16.msra.mxu0 0
        %1299 = vmatpush.bf16.msra.mxu0 0
        %1300 = vmatpush.bf16.msra.mxu0 0
        %1301 = vmatpush.bf16.msra.mxu0 0
        %1302 = vmatpush.bf16.msra.mxu0 %v1293
        %1303 = vmatmul.bf16.gmra.mxu0 %v1290
        %v1304 = vpop.f32.mrf.mxu0
        %v1305 = vadd.f32 0.0, %v1304
        %v1306 = vpop.f32.mrf.mxu0
        %1307 = vdwg.mxu0
        %v1308 = vrot.slane %v1286, 4
        %v1309 = vsel %vm734, %v1308, %v1248
        %v1310 = vrot.slane %v1248, 4
        %v1311 = vsel %vm734, %v1286, %v1310
        %v1313 = vunpack.c.l.s4 1983009808
        %v1314 = vunpack.c.0.s8 %v1313
        %v1315 = vperm.slane %v1309, %v1314
        %v1317 = vunpack.c.l.s4 1983009808
        %v1318 = vunpack.c.0.s8 %v1317
        %v1319 = vperm.slane %v1311, %v1318
        %v1320 = vrot.slane %v1305, 4
        %v1321 = vsel %vm734, %v1320, %v1267
        %v1322 = vrot.slane %v1267, 4
        %v1323 = vsel %vm734, %v1305, %v1322
        %v1325 = vunpack.c.l.s4 1983009808
        %v1326 = vunpack.c.0.s8 %v1325
        %v1327 = vperm.slane %v1321, %v1326
        %v1329 = vunpack.c.l.s4 1983009808
        %v1330 = vunpack.c.0.s8 %v1329
        %v1331 = vperm.slane %v1323, %v1330
        %v1332 = vrot.slane %v1327, 4
        %v1333 = vsel %vm734, %v1332, %v1315
        %v1334 = vrot.slane %v1315, 4
        %v1335 = vsel %vm734, %v1327, %v1334
        %v1337 = vunpack.c.l.s4 1934713408
        %v1338 = vunpack.c.0.s8 %v1337
        %v1339 = vperm.slane %v1333, %v1338
        %v1341 = vunpack.c.l.s4 1934713408
        %v1342 = vunpack.c.0.s8 %v1341
        %v1343 = vperm.slane %v1335, %v1342
        %v1344 = vrot.slane %v1331, 4
        %v1345 = vsel %vm734, %v1344, %v1319
        %v1346 = vrot.slane %v1319, 4
        %v1347 = vsel %vm734, %v1331, %v1346
        %v1349 = vunpack.c.l.s4 1934713408
        %v1350 = vunpack.c.0.s8 %v1349
        %v1351 = vperm.slane %v1345, %v1350
        %v1353 = vunpack.c.l.s4 1934713408
        %v1354 = vunpack.c.0.s8 %v1353
        %v1355 = vperm.slane %v1347, %v1354
        %v1356 = vrot.slane %v1339, 4
        %v1357 = vsel %vm734, 0.0, %v1356
        %v1358 = vrot.slane %v1343, 4
        %v1359 = vsel %vm734, 0.0, %v1358
        %v1360 = vrot.slane %v1351, 4
        %v1361 = vsel %vm734, 0.0, %v1360
        %v1362 = vrot.slane %v1355, 4
        %v1363 = vsel %vm734, 0.0, %v1362
        %v1364 = vsel %vm734, %v1358, %v1339
        %v1366 = vunpack.c.l.s4 1983009808
        %v1367 = vunpack.c.0.s8 %v1366
        %v1368 = vperm.slane %v1364, %v1367
        %v1369 = vrot.slane %v1359, 4
        %v1370 = vsel %vm734, %v1369, %v1357
        %v1372 = vunpack.c.l.s4 1983009808
        %v1373 = vunpack.c.0.s8 %v1372
        %v1374 = vperm.slane %v1370, %v1373
        %v1375 = vsel %vm734, %v1362, %v1351
        %v1377 = vunpack.c.l.s4 1983009808
        %v1378 = vunpack.c.0.s8 %v1377
        %v1379 = vperm.slane %v1375, %v1378
        %v1380 = vrot.slane %v1363, 4
        %v1381 = vsel %vm734, %v1380, %v1361
        %v1383 = vunpack.c.l.s4 1983009808
        %v1384 = vunpack.c.0.s8 %v1383
        %v1385 = vperm.slane %v1381, %v1384
        %v1386 = vrot.slane %v1374, 4
        %v1387 = vsel %vm734, %v1386, %v1368
        %v1388 = vrot.slane %v1368, 4
        %v1389 = vsel %vm734, %v1374, %v1388
        %v1391 = vunpack.c.l.s4 1934713408
        %v1392 = vunpack.c.0.s8 %v1391
        %v1393 = vperm.slane %v1387, %v1392
        %v1395 = vunpack.c.l.s4 1934713408
        %v1396 = vunpack.c.0.s8 %v1395
        %v1397 = vperm.slane %v1389, %v1396
        %v1398 = vrot.slane %v1385, 4
        %v1399 = vsel %vm734, %v1398, %v1379
        %v1400 = vrot.slane %v1379, 4
        %v1401 = vsel %vm734, %v1385, %v1400
        %v1403 = vunpack.c.l.s4 1934713408
        %v1404 = vunpack.c.0.s8 %v1403
        %v1405 = vperm.slane %v1399, %v1404
        %v1407 = vunpack.c.l.s4 1934713408
        %v1408 = vunpack.c.0.s8 %v1407
        %v1409 = vperm.slane %v1401, %v1408
        %v1410 = vrot.slane %v1405, 4
        %v1411 = vsel %vm734, %v1410, %v1393
        %v1412 = vrot.slane %v1393, 4
        %v1413 = vsel %vm734, %v1405, %v1412
        %v1414 = vrot.slane %v1409, 4
        %v1415 = vsel %vm734, %v1414, %v1397
        %v1416 = vrot.slane %v1397, 4
        %v1417 = vsel %vm734, %v1409, %v1416
        %1419 = vrot.lane.b32.xlu0 %v1413, 8
        %v1420 = vpop.permute.xlu0 %1419
        %1423 = vrot.lane.b32.xlu0 %v1415, 16
        %v1424 = vpop.permute.xlu0 %1423
        %1427 = vrot.lane.b32.xlu0 %v1417, 24
        %v1428 = vpop.permute.xlu0 %1427
        %v1430 = vsel %vm1100, %v1411, %v1420
        %vm1431 = vcmask 130048
        %v1432 = vsel %vm1431, %v1430, %v1424
        %vm1433 = vcmask 195584
        %v1434 = vsel %vm1433, %v1432, %v1428
        %v1435 = vpack.c.bf16 %v1434, %v1434
        %v1436 = vld [vmem:[%s4] sm:$0xf]
        %v1437 = vld [vmem:[%s4 + $0x4] sm:$0xf]
        %v1438 = vld [vmem:[%s4 + $0x8] sm:$0xf]
        %v1439 = vld [vmem:[%s4 + $0xc] sm:$0xf]
        %v1444 = vunpack.c.l.b16 %v1436
        %v1445 = vunpack.c.l.b16 %v1437
        %v1446 = vunpack.c.l.b16 %v1438
        %v1447 = vunpack.c.l.b16 %v1439
        %v1448 = vpack.c.b16 %v1445, %v1444
        %v1449 = vpack.c.b16 %v1447, %v1446
        %v1453 = vsel %vm706, %v1435, 0
        %1455 = vmatpush.bf16.msra.mxu0 0
        %1456 = vmatpush.bf16.msra.mxu0 0
        %1457 = vmatpush.bf16.msra.mxu0 0
        %1458 = vmatpush.bf16.msra.mxu0 0
        %1459 = vmatpush.bf16.msra.mxu0 0
        %1460 = vmatpush.bf16.msra.mxu0 0
        %1461 = vmatpush.bf16.msra.mxu0 %v1449
        %1462 = vmatpush.bf16.msra.mxu0 %v1448
        %1463 = vmatmul.bf16.gmra.mxu0 %v1453
        %v1464 = vpop.f32.mrf.mxu0
        %v1465 = vadd.f32 0.0, %v1464
        %v1466 = vpop.f32.mrf.mxu0
        %1467 = vdwg.mxu0
        %v1468 = vadd.f32 %v678, %v1465
        %v1469 = vsel %vm706, %v1468, 0.0
        %1470 = vadd.xlane.f32.xlu0 %v1469
        %v1471 = vpop.xlane.xlu0 %1470
        %v1472 = vrcp.pop 32.0
        %v1473 = vmul.f32 32.0, %v1472
        %v1474 = vsub.f32 1.0, %v1473
        %v1475 = vmul.f32 %v1472, %v1474
        %v1476 = vadd.f32 %v1472, %v1475
        %vm1477 = vweird.f32 %v1472
        %v1478 = vsel %vm1477, %v1472, %v1476
        %v1479 = vmul.f32 %v1471, %v1478
        %v1480 = vsub.f32 %v1468, %v1479
        %v1481 = vmul.f32 %v1480, %v1480
        %v1482 = vsel %vm706, %v1481, 0.0
        %1483 = vadd.xlane.f32.xlu0 %v1482
        %v1484 = vpop.xlane.xlu0 %1483
        %v1485 = vmul.f32 %v1484, %v1478
        %v1486 = vadd.f32 %v1485, 1e-05
        %v1487 = vrsqrt.pop %v1486
        %v1488 = vmul.f32 %v1487, %v1486
        %v1489 = vmul.f32 %v1488, %v1487
        %v1490 = vmul.f32 0.5, %v1489
        %v1491 = vsub.f32 1.5, %v1490
        %v1492 = vmul.f32 %v1487, %v1491
        %vm1493 = vweird.f32 %v1486
        %vm1494 = vweird.f32 %v1487
        %vm1495 = vmor %vm1493, %vm1494
        %v1496 = vsel %vm1495, %v1487, %v1492
        %v1497 = vmul.f32 %v1480, %v1496
        %v1498 = vld [vmem:[%s5] sm:$0x1]
        %v1500 = vperm.slane %v1498, 0
        %v1502 = vmul.f32 %v1497, %v1500
        %v1503 = vld [vmem:[%s6] sm:$0x1]
        %v1505 = vperm.slane %v1503, 0
        %v1507 = vadd.f32 %v1502, %v1505
        %v1508 = vpack.c.bf16 %v1507, %v1507
        %v1509 = vld [vmem:[%s7] sm:$0xf]
        %v1510 = vld [vmem:[%s7 + $0x4] sm:$0xf]
        %v1511 = vld [vmem:[%s7 + $0x8] sm:$0xf]
        %v1512 = vld [vmem:[%s7 + $0xc] sm:$0xf]
        %v1517 = vunpack.c.l.b16 %v1509
        %v1518 = vunpack.c.l.b16 %v1510
        %v1519 = vunpack.c.l.b16 %v1511
        %v1520 = vunpack.c.l.b16 %v1512
        %v1521 = vpack.c.b16 %v1518, %v1517
        %v1522 = vpack.c.b16 %v1520, %v1519
        %v1526 = vsel %vm706, %v1508, 0
        %1528 = vmatpush.bf16.msra.mxu0 0
        %1529 = vmatpush.bf16.msra.mxu0 0
        %1530 = vmatpush.bf16.msra.mxu0 0
        %1531 = vmatpush.bf16.msra.mxu0 0
        %1532 = vmatpush.bf16.msra.mxu0 0
        %1533 = vmatpush.bf16.msra.mxu0 0
        %1534 = vmatpush.bf16.msra.mxu0 %v1522
        %1535 = vmatpush.bf16.msra.mxu0 %v1521
        %1536 = vmatmul.bf16.gmra.mxu0 %v1526
        %v1537 = vpop.f32.mrf.mxu0
        %v1538 = vadd.f32 0.0, %v1537
        %v1539 = vpop.f32.mrf.mxu0
        %1540 = vdwg.mxu0
        %v1541 = vpack.c.bf16 %v679, %v679
        %v1542 = vld [vmem:[#allocation5] sm:$0xf]
        %v1543 = vld [vmem:[#allocation5 + $0x4] sm:$0xf]
        %v1544 = vld [vmem:[#allocation5 + $0x8] sm:$0xf]
        %v1545 = vld [vmem:[#allocation5 + $0xc] sm:$0xf]
        %v1550 = vunpack.c.l.b16 %v1542
        %v1551 = vunpack.c.l.b16 %v1543
        %v1552 = vunpack.c.l.b16 %v1544
        %v1553 = vunpack.c.l.b16 %v1545
        %v1554 = vpack.c.b16 %v1551, %v1550
        %v1555 = vpack.c.b16 %v1553, %v1552
        %v1559 = vsel %vm706, %v1541, 0
        %1561 = vmatpush.bf16.msra.mxu0 0
        %1562 = vmatpush.bf16.msra.mxu0 0
        %1563 = vmatpush.bf16.msra.mxu0 0
        %1564 = vmatpush.bf16.msra.mxu0 0
        %1565 = vmatpush.bf16.msra.mxu0 0
        %1566 = vmatpush.bf16.msra.mxu0 0
        %1567 = vmatpush.bf16.msra.mxu0 %v1555
        %1568 = vmatpush.bf16.msra.mxu0 %v1554
        %1569 = vmatmul.bf16.gmra.mxu0 %v1559
        %v1570 = vpop.f32.mrf.mxu0
        %v1571 = vadd.f32 0.0, %v1570
        %v1572 = vpop.f32.mrf.mxu0
        %1573 = vdwg.mxu0
        %1575 = vrot.lane.b32.xlu0 %v1538, 120
        %v1576 = vpop.permute.xlu0 %1575
        %1578 = vrot.lane.b32.xlu0 %v1538, 112
        %v1579 = vpop.permute.xlu0 %1578
        %1581 = vrot.lane.b32.xlu0 %v1538, 104
        %v1582 = vpop.permute.xlu0 %1581
        %v1584 = vrot.slane %v1579, 4
        %v1585 = vsel %vm734, %v1584, %v1538
        %v1586 = vrot.slane %v1538, 4
        %v1587 = vsel %vm734, %v1579, %v1586
        %v1589 = vunpack.c.l.s4 1983009808
        %v1590 = vunpack.c.0.s8 %v1589
        %v1591 = vperm.slane %v1585, %v1590
        %v1593 = vunpack.c.l.s4 1983009808
        %v1594 = vunpack.c.0.s8 %v1593
        %v1595 = vperm.slane %v1587, %v1594
        %v1596 = vrot.slane %v1582, 4
        %v1597 = vsel %vm734, %v1596, %v1576
        %v1598 = vrot.slane %v1576, 4
        %v1599 = vsel %vm734, %v1582, %v1598
        %v1601 = vunpack.c.l.s4 1983009808
        %v1602 = vunpack.c.0.s8 %v1601
        %v1603 = vperm.slane %v1597, %v1602
        %v1605 = vunpack.c.l.s4 1983009808
        %v1606 = vunpack.c.0.s8 %v1605
        %v1607 = vperm.slane %v1599, %v1606
        %v1608 = vrot.slane %v1603, 4
        %v1609 = vsel %vm734, %v1608, %v1591
        %v1610 = vrot.slane %v1591, 4
        %v1611 = vsel %vm734, %v1603, %v1610
        %v1613 = vunpack.c.l.s4 1934713408
        %v1614 = vunpack.c.0.s8 %v1613
        %v1615 = vperm.slane %v1609, %v1614
        %v1617 = vunpack.c.l.s4 1934713408
        %v1618 = vunpack.c.0.s8 %v1617
        %v1619 = vperm.slane %v1611, %v1618
        %v1620 = vrot.slane %v1607, 4
        %v1621 = vsel %vm734, %v1620, %v1595
        %v1622 = vrot.slane %v1595, 4
        %v1623 = vsel %vm734, %v1607, %v1622
        %v1625 = vunpack.c.l.s4 1934713408
        %v1626 = vunpack.c.0.s8 %v1625
        %v1627 = vperm.slane %v1621, %v1626
        %v1629 = vunpack.c.l.s4 1934713408
        %v1630 = vunpack.c.0.s8 %v1629
        %v1631 = vperm.slane %v1623, %v1630
        %v1632 = vrot.slane %v1615, 4
        %v1633 = vsel %vm734, 0.0, %v1632
        %v1634 = vrot.slane %v1619, 4
        %v1635 = vsel %vm734, 0.0, %v1634
        %v1636 = vrot.slane %v1627, 4
        %v1637 = vsel %vm734, 0.0, %v1636
        %v1638 = vrot.slane %v1631, 4
        %v1639 = vsel %vm734, 0.0, %v1638
        %v1640 = vsel %vm734, %v1634, %v1615
        %v1642 = vunpack.c.l.s4 1983009808
        %v1643 = vunpack.c.0.s8 %v1642
        %v1644 = vperm.slane %v1640, %v1643
        %v1645 = vrot.slane %v1635, 4
        %v1646 = vsel %vm734, %v1645, %v1633
        %v1648 = vunpack.c.l.s4 1983009808
        %v1649 = vunpack.c.0.s8 %v1648
        %v1650 = vperm.slane %v1646, %v1649
        %v1651 = vsel %vm734, %v1638, %v1627
        %v1653 = vunpack.c.l.s4 1983009808
        %v1654 = vunpack.c.0.s8 %v1653
        %v1655 = vperm.slane %v1651, %v1654
        %v1656 = vrot.slane %v1639, 4
        %v1657 = vsel %vm734, %v1656, %v1637
        %v1659 = vunpack.c.l.s4 1983009808
        %v1660 = vunpack.c.0.s8 %v1659
        %v1661 = vperm.slane %v1657, %v1660
        %v1662 = vrot.slane %v1650, 4
        %v1663 = vsel %vm734, %v1662, %v1644
        %v1664 = vrot.slane %v1644, 4
        %v1665 = vsel %vm734, %v1650, %v1664
        %v1667 = vunpack.c.l.s4 1934713408
        %v1668 = vunpack.c.0.s8 %v1667
        %v1669 = vperm.slane %v1663, %v1668
        %v1671 = vunpack.c.l.s4 1934713408
        %v1672 = vunpack.c.0.s8 %v1671
        %v1673 = vperm.slane %v1665, %v1672
        %v1674 = vrot.slane %v1661, 4
        %v1675 = vsel %vm734, %v1674, %v1655
        %v1676 = vrot.slane %v1655, 4
        %v1677 = vsel %vm734, %v1661, %v1676
        %v1679 = vunpack.c.l.s4 1934713408
        %v1680 = vunpack.c.0.s8 %v1679
        %v1681 = vperm.slane %v1675, %v1680
        %v1683 = vunpack.c.l.s4 1934713408
        %v1684 = vunpack.c.0.s8 %v1683
        %v1685 = vperm.slane %v1677, %v1684
        %v1686 = vrot.slane %v1681, 4
        %v1687 = vsel %vm734, %v1686, %v1669
        %v1688 = vrot.slane %v1669, 4
        %v1689 = vsel %vm734, %v1681, %v1688
        %v1690 = vrot.slane %v1685, 4
        %v1691 = vsel %vm734, %v1690, %v1673
        %v1692 = vrot.slane %v1673, 4
        %v1693 = vsel %vm734, %v1685, %v1692
        %v1694 = vpack.c.bf16 %v1687, %v1687
        %v1695 = vpack.c.bf16 %v1689, %v1689
        %v1696 = vpack.c.bf16 %v1691, %v1691
        %v1697 = vpack.c.bf16 %v1693, %v1693
        %1699 = vrot.lane.b32.xlu0 %v1571, 120
        %v1700 = vpop.permute.xlu0 %1699
        %1702 = vrot.lane.b32.xlu0 %v1571, 112
        %v1703 = vpop.permute.xlu0 %1702
        %1705 = vrot.lane.b32.xlu0 %v1571, 104
        %v1706 = vpop.permute.xlu0 %1705
        %v1708 = vrot.slane %v1703, 4
        %v1709 = vsel %vm734, %v1708, %v1571
        %v1710 = vrot.slane %v1571, 4
        %v1711 = vsel %vm734, %v1703, %v1710
        %v1713 = vunpack.c.l.s4 1983009808
        %v1714 = vunpack.c.0.s8 %v1713
        %v1715 = vperm.slane %v1709, %v1714
        %v1717 = vunpack.c.l.s4 1983009808
        %v1718 = vunpack.c.0.s8 %v1717
        %v1719 = vperm.slane %v1711, %v1718
        %v1720 = vrot.slane %v1706, 4
        %v1721 = vsel %vm734, %v1720, %v1700
        %v1722 = vrot.slane %v1700, 4
        %v1723 = vsel %vm734, %v1706, %v1722
        %v1725 = vunpack.c.l.s4 1983009808
        %v1726 = vunpack.c.0.s8 %v1725
        %v1727 = vperm.slane %v1721, %v1726
        %v1729 = vunpack.c.l.s4 1983009808
        %v1730 = vunpack.c.0.s8 %v1729
        %v1731 = vperm.slane %v1723, %v1730
        %v1732 = vrot.slane %v1727, 4
        %v1733 = vsel %vm734, %v1732, %v1715
        %v1734 = vrot.slane %v1715, 4
        %v1735 = vsel %vm734, %v1727, %v1734
        %v1737 = vunpack.c.l.s4 1934713408
        %v1738 = vunpack.c.0.s8 %v1737
        %v1739 = vperm.slane %v1733, %v1738
        %v1741 = vunpack.c.l.s4 1934713408
        %v1742 = vunpack.c.0.s8 %v1741
        %v1743 = vperm.slane %v1735, %v1742
        %v1744 = vrot.slane %v1731, 4
        %v1745 = vsel %vm734, %v1744, %v1719
        %v1746 = vrot.slane %v1719, 4
        %v1747 = vsel %vm734, %v1731, %v1746
        %v1749 = vunpack.c.l.s4 1934713408
        %v1750 = vunpack.c.0.s8 %v1749
        %v1751 = vperm.slane %v1745, %v1750
        %v1753 = vunpack.c.l.s4 1934713408
        %v1754 = vunpack.c.0.s8 %v1753
        %v1755 = vperm.slane %v1747, %v1754
        %v1756 = vrot.slane %v1739, 4
        %v1757 = vsel %vm734, 0.0, %v1756
        %v1758 = vrot.slane %v1743, 4
        %v1759 = vsel %vm734, 0.0, %v1758
        %v1760 = vrot.slane %v1751, 4
        %v1761 = vsel %vm734, 0.0, %v1760
        %v1762 = vrot.slane %v1755, 4
        %v1763 = vsel %vm734, 0.0, %v1762
        %v1764 = vsel %vm734, %v1758, %v1739
        %v1766 = vunpack.c.l.s4 1983009808
        %v1767 = vunpack.c.0.s8 %v1766
        %v1768 = vperm.slane %v1764, %v1767
        %v1769 = vrot.slane %v1759, 4
        %v1770 = vsel %vm734, %v1769, %v1757
        %v1772 = vunpack.c.l.s4 1983009808
        %v1773 = vunpack.c.0.s8 %v1772
        %v1774 = vperm.slane %v1770, %v1773
        %v1775 = vsel %vm734, %v1762, %v1751
        %v1777 = vunpack.c.l.s4 1983009808
        %v1778 = vunpack.c.0.s8 %v1777
        %v1779 = vperm.slane %v1775, %v1778
        %v1780 = vrot.slane %v1763, 4
        %v1781 = vsel %vm734, %v1780, %v1761
        %v1783 = vunpack.c.l.s4 1983009808
        %v1784 = vunpack.c.0.s8 %v1783
        %v1785 = vperm.slane %v1781, %v1784
        %v1786 = vrot.slane %v1774, 4
        %v1787 = vsel %vm734, %v1786, %v1768
        %v1788 = vrot.slane %v1768, 4
        %v1789 = vsel %vm734, %v1774, %v1788
        %v1791 = vunpack.c.l.s4 1934713408
        %v1792 = vunpack.c.0.s8 %v1791
        %v1793 = vperm.slane %v1787, %v1792
        %v1795 = vunpack.c.l.s4 1934713408
        %v1796 = vunpack.c.0.s8 %v1795
        %v1797 = vperm.slane %v1789, %v1796
        %v1798 = vrot.slane %v1785, 4
        %v1799 = vsel %vm734, %v1798, %v1779
        %v1800 = vrot.slane %v1779, 4
        %v1801 = vsel %vm734, %v1785, %v1800
        %v1803 = vunpack.c.l.s4 1934713408
        %v1804 = vunpack.c.0.s8 %v1803
        %v1805 = vperm.slane %v1799, %v1804
        %v1807 = vunpack.c.l.s4 1934713408
        %v1808 = vunpack.c.0.s8 %v1807
        %v1809 = vperm.slane %v1801, %v1808
        %v1810 = vrot.slane %v1805, 4
        %v1811 = vsel %vm734, %v1810, %v1793
        %v1812 = vrot.slane %v1793, 4
        %v1813 = vsel %vm734, %v1805, %v1812
        %v1814 = vrot.slane %v1809, 4
        %v1815 = vsel %vm734, %v1814, %v1797
        %v1816 = vrot.slane %v1797, 4
        %v1817 = vsel %vm734, %v1809, %v1816
        %v1818 = vpack.c.bf16 %v1811, %v1811
        %v1819 = vpack.c.bf16 %v1813, %v1813
        %v1820 = vpack.c.bf16 %v1815, %v1815
        %v1821 = vpack.c.bf16 %v1817, %v1817
        %1822 = vrot.lane.b32.xlu0 %v1571, 96
        %v1823 = vpop.permute.xlu0 %1822
        %1824 = vrot.lane.b32.xlu0 %v1700, 96
        %v1825 = vpop.permute.xlu0 %1824
        %1826 = vrot.lane.b32.xlu0 %v1703, 96
        %v1827 = vpop.permute.xlu0 %1826
        %1828 = vrot.lane.b32.xlu0 %v1706, 96
        %v1829 = vpop.permute.xlu0 %1828
        %v1834 = vrot.slane %v1827, 4
        %v1835 = vsel %vm734, %v1834, %v1823
        %v1836 = vrot.slane %v1823, 4
        %v1837 = vsel %vm734, %v1827, %v1836
        %v1839 = vunpack.c.l.s4 1983009808
        %v1840 = vunpack.c.0.s8 %v1839
        %v1841 = vperm.slane %v1835, %v1840
        %v1843 = vunpack.c.l.s4 1983009808
        %v1844 = vunpack.c.0.s8 %v1843
        %v1845 = vperm.slane %v1837, %v1844
        %v1846 = vrot.slane %v1829, 4
        %v1847 = vsel %vm734, %v1846, %v1825
        %v1848 = vrot.slane %v1825, 4
        %v1849 = vsel %vm734, %v1829, %v1848
        %v1851 = vunpack.c.l.s4 1983009808
        %v1852 = vunpack.c.0.s8 %v1851
        %v1853 = vperm.slane %v1847, %v1852
        %v1855 = vunpack.c.l.s4 1983009808
        %v1856 = vunpack.c.0.s8 %v1855
        %v1857 = vperm.slane %v1849, %v1856
        %v1858 = vrot.slane %v1853, 4
        %v1859 = vsel %vm734, %v1858, %v1841
        %v1860 = vrot.slane %v1841, 4
        %v1861 = vsel %vm734, %v1853, %v1860
        %v1863 = vunpack.c.l.s4 1934713408
        %v1864 = vunpack.c.0.s8 %v1863
        %v1865 = vperm.slane %v1859, %v1864
        %v1867 = vunpack.c.l.s4 1934713408
        %v1868 = vunpack.c.0.s8 %v1867
        %v1869 = vperm.slane %v1861, %v1868
        %v1870 = vrot.slane %v1857, 4
        %v1871 = vsel %vm734, %v1870, %v1845
        %v1872 = vrot.slane %v1845, 4
        %v1873 = vsel %vm734, %v1857, %v1872
        %v1875 = vunpack.c.l.s4 1934713408
        %v1876 = vunpack.c.0.s8 %v1875
        %v1877 = vperm.slane %v1871, %v1876
        %v1879 = vunpack.c.l.s4 1934713408
        %v1880 = vunpack.c.0.s8 %v1879
        %v1881 = vperm.slane %v1873, %v1880
        %v1882 = vrot.slane %v1865, 4
        %v1883 = vsel %vm734, 0.0, %v1882
        %v1884 = vrot.slane %v1869, 4
        %v1885 = vsel %vm734, 0.0, %v1884
        %v1886 = vrot.slane %v1877, 4
        %v1887 = vsel %vm734, 0.0, %v1886
        %v1888 = vrot.slane %v1881, 4
        %v1889 = vsel %vm734, 0.0, %v1888
        %v1890 = vsel %vm734, %v1884, %v1865
        %v1892 = vunpack.c.l.s4 1983009808
        %v1893 = vunpack.c.0.s8 %v1892
        %v1894 = vperm.slane %v1890, %v1893
        %v1895 = vrot.slane %v1885, 4
        %v1896 = vsel %vm734, %v1895, %v1883
        %v1898 = vunpack.c.l.s4 1983009808
        %v1899 = vunpack.c.0.s8 %v1898
        %v1900 = vperm.slane %v1896, %v1899
        %v1901 = vsel %vm734, %v1888, %v1877
        %v1903 = vunpack.c.l.s4 1983009808
        %v1904 = vunpack.c.0.s8 %v1903
        %v1905 = vperm.slane %v1901, %v1904
        %v1906 = vrot.slane %v1889, 4
        %v1907 = vsel %vm734, %v1906, %v1887
        %v1909 = vunpack.c.l.s4 1983009808
        %v1910 = vunpack.c.0.s8 %v1909
        %v1911 = vperm.slane %v1907, %v1910
        %v1912 = vrot.slane %v1900, 4
        %v1913 = vsel %vm734, %v1912, %v1894
        %v1914 = vrot.slane %v1894, 4
        %v1915 = vsel %vm734, %v1900, %v1914
        %v1917 = vunpack.c.l.s4 1934713408
        %v1918 = vunpack.c.0.s8 %v1917
        %v1919 = vperm.slane %v1913, %v1918
        %v1921 = vunpack.c.l.s4 1934713408
        %v1922 = vunpack.c.0.s8 %v1921
        %v1923 = vperm.slane %v1915, %v1922
        %v1924 = vrot.slane %v1911, 4
        %v1925 = vsel %vm734, %v1924, %v1905
        %v1926 = vrot.slane %v1905, 4
        %v1927 = vsel %vm734, %v1911, %v1926
        %v1929 = vunpack.c.l.s4 1934713408
        %v1930 = vunpack.c.0.s8 %v1929
        %v1931 = vperm.slane %v1925, %v1930
        %v1933 = vunpack.c.l.s4 1934713408
        %v1934 = vunpack.c.0.s8 %v1933
        %v1935 = vperm.slane %v1927, %v1934
        %v1936 = vrot.slane %v1931, 4
        %v1937 = vsel %vm734, %v1936, %v1919
        %v1938 = vrot.slane %v1919, 4
        %v1939 = vsel %vm734, %v1931, %v1938
        %v1940 = vrot.slane %v1935, 4
        %v1941 = vsel %vm734, %v1940, %v1923
        %v1942 = vrot.slane %v1923, 4
        %v1943 = vsel %vm734, %v1935, %v1942
        %v1944 = vpack.c.bf16 %v1937, %v1937
        %v1945 = vpack.c.bf16 %v1939, %v1939
        %v1946 = vpack.c.bf16 %v1941, %v1941
        %v1947 = vpack.c.bf16 %v1943, %v1943
        %v1949 = vsel %vm1100, %v1694, 0
        %v1952 = vsel %vm1100, %v1818, 0
        %1954 = vmatpush.bf16.xpose.msra.mxu0 0
        %1955 = vmatpush.bf16.xpose.msra.mxu0 0
        %1956 = vmatpush.bf16.xpose.msra.mxu0 0
        %1957 = vmatpush.bf16.xpose.msra.mxu0 0
        %1958 = vmatpush.bf16.xpose.msra.mxu0 0
        %1959 = vmatpush.bf16.xpose.msra.mxu0 0
        %1960 = vmatpush.bf16.xpose.msra.mxu0 0
        %1961 = vmatpush.bf16.xpose.msra.mxu0 %v1952
        %1962 = vmatmul.bf16.gmra.mxu0 %v1949
        %v1963 = vpop.f32.mrf.mxu0
        %v1964 = vadd.f32 0.0, %v1963
        %v1965 = vpop.f32.mrf.mxu0
        %1966 = vdwg.mxu0
        %v1968 = vsel %vm1100, %v1695, 0
        %v1971 = vsel %vm1100, %v1819, 0
        %1973 = vmatpush.bf16.xpose.msra.mxu0 0
        %1974 = vmatpush.bf16.xpose.msra.mxu0 0
        %1975 = vmatpush.bf16.xpose.msra.mxu0 0
        %1976 = vmatpush.bf16.xpose.msra.mxu0 0
        %1977 = vmatpush.bf16.xpose.msra.mxu0 0
        %1978 = vmatpush.bf16.xpose.msra.mxu0 0
        %1979 = vmatpush.bf16.xpose.msra.mxu0 0
        %1980 = vmatpush.bf16.xpose.msra.mxu0 %v1971
        %1981 = vmatmul.bf16.gmra.mxu0 %v1968
        %v1982 = vpop.f32.mrf.mxu0
        %v1983 = vadd.f32 0.0, %v1982
        %v1984 = vpop.f32.mrf.mxu0
        %1985 = vdwg.mxu0
        %v1987 = vsel %vm1100, %v1696, 0
        %v1990 = vsel %vm1100, %v1820, 0
        %1992 = vmatpush.bf16.xpose.msra.mxu0 0
        %1993 = vmatpush.bf16.xpose.msra.mxu0 0
        %1994 = vmatpush.bf16.xpose.msra.mxu0 0
        %1995 = vmatpush.bf16.xpose.msra.mxu0 0
        %1996 = vmatpush.bf16.xpose.msra.mxu0 0
        %1997 = vmatpush.bf16.xpose.msra.mxu0 0
        %1998 = vmatpush.bf16.xpose.msra.mxu0 0
        %1999 = vmatpush.bf16.xpose.msra.mxu0 %v1990
        %2000 = vmatmul.bf16.gmra.mxu0 %v1987
        %v2001 = vpop.f32.mrf.mxu0
        %v2002 = vadd.f32 0.0, %v2001
        %v2003 = vpop.f32.mrf.mxu0
        %2004 = vdwg.mxu0
        %v2006 = vsel %vm1100, %v1697, 0
        %v2009 = vsel %vm1100, %v1821, 0
        %2011 = vmatpush.bf16.xpose.msra.mxu0 0
        %2012 = vmatpush.bf16.xpose.msra.mxu0 0
        %2013 = vmatpush.bf16.xpose.msra.mxu0 0
        %2014 = vmatpush.bf16.xpose.msra.mxu0 0
        %2015 = vmatpush.bf16.xpose.msra.mxu0 0
        %2016 = vmatpush.bf16.xpose.msra.mxu0 0
        %2017 = vmatpush.bf16.xpose.msra.mxu0 0
        %2018 = vmatpush.bf16.xpose.msra.mxu0 %v2009
        %2019 = vmatmul.bf16.gmra.mxu0 %v2006
        %v2020 = vpop.f32.mrf.mxu0
        %v2021 = vadd.f32 0.0, %v2020
        %v2022 = vpop.f32.mrf.mxu0
        %2023 = vdwg.mxu0
        %v2024 = vsel %vm683, 1, 0
        %vm2025 = vcmp.eq.s32.totalorder %v2024, 1
        %v2026 = vsel %vm2025, -1e+30, %v1964
        %v2027 = vsel %vm2025, -1e+30, %v1983
        %v2028 = vsel %vm2025, -1e+30, %v2002
        %v2029 = vsel %vm2025, -1e+30, %v2021
        %v2030 = vsel %vm1100, %v2026, -inf
        %2031 = vmax.xlane.f32.xlu0 %v2030
        %v2032 = vpop.xlane.xlu0 %2031
        %v2033 = vsel %vm1100, %v2027, -inf
        %2034 = vmax.xlane.f32.xlu0 %v2033
        %v2035 = vpop.xlane.xlu0 %2034
        %v2036 = vsel %vm1100, %v2028, -inf
        %2037 = vmax.xlane.f32.xlu0 %v2036
        %v2038 = vpop.xlane.xlu0 %2037
        %v2039 = vsel %vm1100, %v2029, -inf
        %2040 = vmax.xlane.f32.xlu0 %v2039
        %v2041 = vpop.xlane.xlu0 %2040
        %v2042 = vsub.f32 %v2026, %v2032
        %v2043 = vsub.f32 %v2027, %v2035
        %v2044 = vsub.f32 %v2028, %v2038
        %v2045 = vsub.f32 %v2029, %v2041
        %v2046 = vmul.f32 %v2042, 1.442695
        %v2047 = vpow.pop %v2046
        %v2048 = vmul.f32 %v2043, 1.442695
        %v2049 = vpow.pop %v2048
        %v2050 = vmul.f32 %v2044, 1.442695
        %v2051 = vpow.pop %v2050
        %v2052 = vmul.f32 %v2045, 1.442695
        %v2053 = vpow.pop %v2052
        %v2054 = vsel %vm1100, %v2047, 0.0
        %2055 = vadd.xlane.f32.xlu0 %v2054
        %v2056 = vpop.xlane.xlu0 %2055
        %v2057 = vsel %vm1100, %v2049, 0.0
        %2058 = vadd.xlane.f32.xlu0 %v2057
        %v2059 = vpop.xlane.xlu0 %2058
        %v2060 = vsel %vm1100, %v2051, 0.0
        %2061 = vadd.xlane.f32.xlu0 %v2060
        %v2062 = vpop.xlane.xlu0 %2061
        %v2063 = vsel %vm1100, %v2053, 0.0
        %2064 = vadd.xlane.f32.xlu0 %v2063
        %v2065 = vpop.xlane.xlu0 %2064
        %v2066 = vrcp.pop %v2056
        %v2067 = vrcp.pop %v2059
        %v2068 = vrcp.pop %v2062
        %v2069 = vrcp.pop %v2065
        %v2070 = vmul.f32 %v2047, %v2066
        %v2071 = vmul.f32 %v2049, %v2067
        %v2072 = vmul.f32 %v2051, %v2068
        %v2073 = vmul.f32 %v2053, %v2069
        %v2074 = vpack.c.bf16 %v2070, %v2070
        %v2075 = vpack.c.bf16 %v2071, %v2071
        %v2076 = vpack.c.bf16 %v2072, %v2072
        %v2077 = vpack.c.bf16 %v2073, %v2073
        %v2079 = vsel %vm1100, %v2074, 0
        %v2082 = vsel %vm1234, %v1944, 0
        %2084 = vmatpush.bf16.msra.mxu0 0
        %2085 = vmatpush.bf16.msra.mxu0 0
        %2086 = vmatpush.bf16.msra.mxu0 0
        %2087 = vmatpush.bf16.msra.mxu0 0
        %2088 = vmatpush.bf16.msra.mxu0 0
        %2089 = vmatpush.bf16.msra.mxu0 0
        %2090 = vmatpush.bf16.msra.mxu0 0
        %2091 = vmatpush.bf16.msra.mxu0 %v2082
        %2092 = vmatmul.bf16.gmra.mxu0 %v2079
        %v2093 = vpop.f32.mrf.mxu0
        %v2094 = vadd.f32 0.0, %v2093
        %v2095 = vpop.f32.mrf.mxu0
        %2096 = vdwg.mxu0
        %v2098 = vsel %vm1100, %v2075, 0
        %v2101 = vsel %vm1234, %v1945, 0
        %2103 = vmatpush.bf16.msra.mxu0 0
        %2104 = vmatpush.bf16.msra.mxu0 0
        %2105 = vmatpush.bf16.msra.mxu0 0
        %2106 = vmatpush.bf16.msra.mxu0 0
        %2107 = vmatpush.bf16.msra.mxu0 0
        %2108 = vmatpush.bf16.msra.mxu0 0
        %2109 = vmatpush.bf16.msra.mxu0 0
        %2110 = vmatpush.bf16.msra.mxu0 %v2101
        %2111 = vmatmul.bf16.gmra.mxu0 %v2098
        %v2112 = vpop.f32.mrf.mxu0
        %v2113 = vadd.f32 0.0, %v2112
        %v2114 = vpop.f32.mrf.mxu0
        %2115 = vdwg.mxu0
        %v2117 = vsel %vm1100, %v2076, 0
        %v2120 = vsel %vm1234, %v1946, 0
        %2122 = vmatpush.bf16.msra.mxu0 0
        %2123 = vmatpush.bf16.msra.mxu0 0
        %2124 = vmatpush.bf16.msra.mxu0 0
        %2125 = vmatpush.bf16.msra.mxu0 0
        %2126 = vmatpush.bf16.msra.mxu0 0
        %2127 = vmatpush.bf16.msra.mxu0 0
        %2128 = vmatpush.bf16.msra.mxu0 0
        %2129 = vmatpush.bf16.msra.mxu0 %v2120
        %2130 = vmatmul.bf16.gmra.mxu0 %v2117
        %v2131 = vpop.f32.mrf.mxu0
        %v2132 = vadd.f32 0.0, %v2131
        %v2133 = vpop.f32.mrf.mxu0
        %2134 = vdwg.mxu0
        %v2136 = vsel %vm1100, %v2077, 0
        %v2139 = vsel %vm1234, %v1947, 0
        %2141 = vmatpush.bf16.msra.mxu0 0
        %2142 = vmatpush.bf16.msra.mxu0 0
        %2143 = vmatpush.bf16.msra.mxu0 0
        %2144 = vmatpush.bf16.msra.mxu0 0
        %2145 = vmatpush.bf16.msra.mxu0 0
        %2146 = vmatpush.bf16.msra.mxu0 0
        %2147 = vmatpush.bf16.msra.mxu0 0
        %2148 = vmatpush.bf16.msra.mxu0 %v2139
        %2149 = vmatmul.bf16.gmra.mxu0 %v2136
        %v2150 = vpop.f32.mrf.mxu0
        %v2151 = vadd.f32 0.0, %v2150
        %v2152 = vpop.f32.mrf.mxu0
        %2153 = vdwg.mxu0
        %v2154 = vrot.slane %v2132, 4
        %v2155 = vsel %vm734, %v2154, %v2094
        %v2156 = vrot.slane %v2094, 4
        %v2157 = vsel %vm734, %v2132, %v2156
        %v2159 = vunpack.c.l.s4 1983009808
        %v2160 = vunpack.c.0.s8 %v2159
        %v2161 = vperm.slane %v2155, %v2160
        %v2163 = vunpack.c.l.s4 1983009808
        %v2164 = vunpack.c.0.s8 %v2163
        %v2165 = vperm.slane %v2157, %v2164
        %v2166 = vrot.slane %v2151, 4
        %v2167 = vsel %vm734, %v2166, %v2113
        %v2168 = vrot.slane %v2113, 4
        %v2169 = vsel %vm734, %v2151, %v2168
        %v2171 = vunpack.c.l.s4 1983009808
        %v2172 = vunpack.c.0.s8 %v2171
        %v2173 = vperm.slane %v2167, %v2172
        %v2175 = vunpack.c.l.s4 1983009808
        %v2176 = vunpack.c.0.s8 %v2175
        %v2177 = vperm.slane %v2169, %v2176
        %v2178 = vrot.slane %v2173, 4
        %v2179 = vsel %vm734, %v2178, %v2161
        %v2180 = vrot.slane %v2161, 4
        %v2181 = vsel %vm734, %v2173, %v2180
        %v2183 = vunpack.c.l.s4 1934713408
        %v2184 = vunpack.c.0.s8 %v2183
        %v2185 = vperm.slane %v2179, %v2184
        %v2187 = vunpack.c.l.s4 1934713408
        %v2188 = vunpack.c.0.s8 %v2187
        %v2189 = vperm.slane %v2181, %v2188
        %v2190 = vrot.slane %v2177, 4
        %v2191 = vsel %vm734, %v2190, %v2165
        %v2192 = vrot.slane %v2165, 4
        %v2193 = vsel %vm734, %v2177, %v2192
        %v2195 = vunpack.c.l.s4 1934713408
        %v2196 = vunpack.c.0.s8 %v2195
        %v2197 = vperm.slane %v2191, %v2196
        %v2199 = vunpack.c.l.s4 1934713408
        %v2200 = vunpack.c.0.s8 %v2199
        %v2201 = vperm.slane %v2193, %v2200
        %v2202 = vrot.slane %v2185, 4
        %v2203 = vsel %vm734, 0.0, %v2202
        %v2204 = vrot.slane %v2189, 4
        %v2205 = vsel %vm734, 0.0, %v2204
        %v2206 = vrot.slane %v2197, 4
        %v2207 = vsel %vm734, 0.0, %v2206
        %v2208 = vrot.slane %v2201, 4
        %v2209 = vsel %vm734, 0.0, %v2208
        %v2210 = vsel %vm734, %v2204, %v2185
        %v2212 = vunpack.c.l.s4 1983009808
        %v2213 = vunpack.c.0.s8 %v2212
        %v2214 = vperm.slane %v2210, %v2213
        %v2215 = vrot.slane %v2205, 4
        %v2216 = vsel %vm734, %v2215, %v2203
        %v2218 = vunpack.c.l.s4 1983009808
        %v2219 = vunpack.c.0.s8 %v2218
        %v2220 = vperm.slane %v2216, %v2219
        %v2221 = vsel %vm734, %v2208, %v2197
        %v2223 = vunpack.c.l.s4 1983009808
        %v2224 = vunpack.c.0.s8 %v2223
        %v2225 = vperm.slane %v2221, %v2224
        %v2226 = vrot.slane %v2209, 4
        %v2227 = vsel %vm734, %v2226, %v2207
        %v2229 = vunpack.c.l.s4 1983009808
        %v2230 = vunpack.c.0.s8 %v2229
        %v2231 = vperm.slane %v2227, %v2230
        %v2232 = vrot.slane %v2220, 4
        %v2233 = vsel %vm734, %v2232, %v2214
        %v2234 = vrot.slane %v2214, 4
        %v2235 = vsel %vm734, %v2220, %v2234
        %v2237 = vunpack.c.l.s4 1934713408
        %v2238 = vunpack.c.0.s8 %v2237
        %v2239 = vperm.slane %v2233, %v2238
        %v2241 = vunpack.c.l.s4 1934713408
        %v2242 = vunpack.c.0.s8 %v2241
        %v2243 = vperm.slane %v2235, %v2242
        %v2244 = vrot.slane %v2231, 4
        %v2245 = vsel %vm734, %v2244, %v2225
        %v2246 = vrot.slane %v2225, 4
        %v2247 = vsel %vm734, %v2231, %v2246
        %v2249 = vunpack.c.l.s4 1934713408
        %v2250 = vunpack.c.0.s8 %v2249
        %v2251 = vperm.slane %v2245, %v2250
        %v2253 = vunpack.c.l.s4 1934713408
        %v2254 = vunpack.c.0.s8 %v2253
        %v2255 = vperm.slane %v2247, %v2254
        %v2256 = vrot.slane %v2251, 4
        %v2257 = vsel %vm734, %v2256, %v2239
        %v2258 = vrot.slane %v2239, 4
        %v2259 = vsel %vm734, %v2251, %v2258
        %v2260 = vrot.slane %v2255, 4
        %v2261 = vsel %vm734, %v2260, %v2243
        %v2262 = vrot.slane %v2243, 4
        %v2263 = vsel %vm734, %v2255, %v2262
        %2265 = vrot.lane.b32.xlu0 %v2259, 8
        %v2266 = vpop.permute.xlu0 %2265
        %2269 = vrot.lane.b32.xlu0 %v2261, 16
        %v2270 = vpop.permute.xlu0 %2269
        %2273 = vrot.lane.b32.xlu0 %v2263, 24
        %v2274 = vpop.permute.xlu0 %2273
        %v2276 = vsel %vm1100, %v2257, %v2266
        %v2277 = vsel %vm1431, %v2276, %v2270
        %v2278 = vsel %vm1433, %v2277, %v2274
        %v2279 = vpack.c.bf16 %v2278, %v2278
        %v2280 = vld [vmem:[#allocation7] sm:$0xf]
        %v2281 = vld [vmem:[#allocation7 + $0x4] sm:$0xf]
        %v2282 = vld [vmem:[#allocation7 + $0x8] sm:$0xf]
        %v2283 = vld [vmem:[#allocation7 + $0xc] sm:$0xf]
        %v2288 = vunpack.c.l.b16 %v2280
        %v2289 = vunpack.c.l.b16 %v2281
        %v2290 = vunpack.c.l.b16 %v2282
        %v2291 = vunpack.c.l.b16 %v2283
        %v2292 = vpack.c.b16 %v2289, %v2288
        %v2293 = vpack.c.b16 %v2291, %v2290
        %v2297 = vsel %vm706, %v2279, 0
        %2299 = vmatpush.bf16.msra.mxu0 0
        %2300 = vmatpush.bf16.msra.mxu0 0
        %2301 = vmatpush.bf16.msra.mxu0 0
        %2302 = vmatpush.bf16.msra.mxu0 0
        %2303 = vmatpush.bf16.msra.mxu0 0
        %2304 = vmatpush.bf16.msra.mxu0 0
        %2305 = vmatpush.bf16.msra.mxu0 %v2293
        %2306 = vmatpush.bf16.msra.mxu0 %v2292
        %2307 = vmatmul.bf16.gmra.mxu0 %v2297
        %v2308 = vpop.f32.mrf.mxu0
        %v2309 = vadd.f32 0.0, %v2308
        %v2310 = vpop.f32.mrf.mxu0
        %2311 = vdwg.mxu0
        %v2312 = vadd.f32 %v1507, %v2309
        %v2313 = vsel %vm706, %v2312, 0.0
        %2314 = vadd.xlane.f32.xlu0 %v2313
        %v2315 = vpop.xlane.xlu0 %2314
        %v2316 = vmul.f32 %v2315, %v1478
        %v2317 = vsub.f32 %v2312, %v2316
        %v2318 = vmul.f32 %v2317, %v2317
        %v2319 = vsel %vm706, %v2318, 0.0
        %2320 = vadd.xlane.f32.xlu0 %v2319
        %v2321 = vpop.xlane.xlu0 %2320
        %v2322 = vmul.f32 %v2321, %v1478
        %v2323 = vadd.f32 %v2322, 1e-05
        %v2324 = vrsqrt.pop %v2323
        %v2325 = vmul.f32 %v2324, %v2323
        %v2326 = vmul.f32 %v2325, %v2324
        %v2327 = vmul.f32 0.5, %v2326
        %v2328 = vsub.f32 1.5, %v2327
        %v2329 = vmul.f32 %v2324, %v2328
        %vm2330 = vweird.f32 %v2323
        %vm2331 = vweird.f32 %v2324
        %vm2332 = vmor %vm2330, %vm2331
        %v2333 = vsel %vm2332, %v2324, %v2329
        %v2334 = vmul.f32 %v2317, %v2333
        %v2335 = vld [vmem:[%s10] sm:$0x1]
        %v2337 = vperm.slane %v2335, 0
        %v2339 = vmul.f32 %v2334, %v2337
        %v2340 = vld [vmem:[%s11] sm:$0x1]
        %v2342 = vperm.slane %v2340, 0
        %v2344 = vadd.f32 %v2339, %v2342
        %v2345 = vpack.c.bf16 %v2344, %v2344
        %v2346 = vld [vmem:[#allocation8] sm:$0xf]
        %v2347 = vld [vmem:[#allocation8 + $0x4] sm:$0xf]
        %v2348 = vld [vmem:[#allocation8 + $0x8] sm:$0xf]
        %v2349 = vld [vmem:[#allocation8 + $0xc] sm:$0xf]
        %v2350 = vld [vmem:[%s13] sm:$0x1]
        %v2352 = vperm.slane %v2350, 0
        %v2358 = vunpack.c.l.b16 %v2346
        %v2359 = vunpack.c.l.b16 %v2347
        %v2360 = vunpack.c.l.b16 %v2348
        %v2361 = vunpack.c.l.b16 %v2349
        %v2362 = vpack.c.b16 %v2359, %v2358
        %v2363 = vpack.c.b16 %v2361, %v2360
        %v2367 = vsel %vm706, %v2345, 0
        %2369 = vmatpush.bf16.msra.mxu0 0
        %2370 = vmatpush.bf16.msra.mxu0 0
        %2371 = vmatpush.bf16.msra.mxu0 0
        %2372 = vmatpush.bf16.msra.mxu0 0
        %2373 = vmatpush.bf16.msra.mxu0 0
        %2374 = vmatpush.bf16.msra.mxu0 0
        %2375 = vmatpush.bf16.msra.mxu0 %v2363
        %2376 = vmatpush.bf16.msra.mxu0 %v2362
        %2377 = vmatmul.bf16.gmra.mxu0 %v2367
        %v2378 = vpop.f32.mrf.mxu0
        %v2379 = vadd.f32 %v2352, %v2378
        %v2380 = vpop.f32.mrf.mxu0
        %2381 = vdwg.mxu0
        %v2382 = vmax.f32 %v2379, 0.0
        %v2383 = vpack.c.bf16 %v2382, %v2382
        %v2384 = vld [vmem:[%s14] sm:$0xf]
        %v2385 = vld [vmem:[%s14 + $0x4] sm:$0xf]
        %v2386 = vld [vmem:[%s14 + $0x8] sm:$0xf]
        %v2387 = vld [vmem:[%s14 + $0xc] sm:$0xf]
        %v2388 = vld [vmem:[%s14 + $0x10] sm:$0xf]
        %v2389 = vld [vmem:[%s14 + $0x14] sm:$0xf]
        %v2390 = vld [vmem:[%s14 + $0x18] sm:$0xf]
        %v2391 = vld [vmem:[%s14 + $0x1c] sm:$0xf]
        %v2392 = vld [vmem:[%s14 + $0x20] sm:$0xf]
        %v2393 = vld [vmem:[%s14 + $0x24] sm:$0xf]
        %v2394 = vld [vmem:[%s14 + $0x28] sm:$0xf]
        %v2395 = vld [vmem:[%s14 + $0x2c] sm:$0xf]
        %v2396 = vld [vmem:[%s14 + $0x30] sm:$0xf]
        %v2397 = vld [vmem:[%s14 + $0x34] sm:$0xf]
        %v2398 = vld [vmem:[%s14 + $0x38] sm:$0xf]
        %v2399 = vld [vmem:[%s14 + $0x3c] sm:$0xf]
        %v2400 = vld [vmem:[%s15] sm:$0x1]
        %v2402 = vperm.slane %v2400, 0
        %v2420 = vunpack.c.l.b16 %v2384
        %v2421 = vunpack.c.l.b16 %v2385
        %v2422 = vunpack.c.l.b16 %v2386
        %v2423 = vunpack.c.l.b16 %v2387
        %v2424 = vunpack.c.l.b16 %v2388
        %v2425 = vunpack.c.l.b16 %v2389
        %v2426 = vunpack.c.l.b16 %v2390
        %v2427 = vunpack.c.l.b16 %v2391
        %v2428 = vunpack.c.l.b16 %v2392
        %v2429 = vunpack.c.l.b16 %v2393
        %v2430 = vunpack.c.l.b16 %v2394
        %v2431 = vunpack.c.l.b16 %v2395
        %v2432 = vunpack.c.l.b16 %v2396
        %v2433 = vunpack.c.l.b16 %v2397
        %v2434 = vunpack.c.l.b16 %v2398
        %v2435 = vunpack.c.l.b16 %v2399
        %v2436 = vpack.c.b16 %v2421, %v2420
        %v2437 = vpack.c.b16 %v2423, %v2422
        %v2438 = vpack.c.b16 %v2425, %v2424
        %v2439 = vpack.c.b16 %v2427, %v2426
        %v2440 = vpack.c.b16 %v2429, %v2428
        %v2441 = vpack.c.b16 %v2431, %v2430
        %v2442 = vpack.c.b16 %v2433, %v2432
        %v2443 = vpack.c.b16 %v2435, %v2434
        %2452 = vmatpush.bf16.msra.mxu0 %v2443
        %2453 = vmatpush.bf16.msra.mxu0 %v2442
        %2454 = vmatpush.bf16.msra.mxu0 %v2441
        %2455 = vmatpush.bf16.msra.mxu0 %v2440
        %2456 = vmatpush.bf16.msra.mxu0 %v2439
        %2457 = vmatpush.bf16.msra.mxu0 %v2438
        %2458 = vmatpush.bf16.msra.mxu0 %v2437
        %2459 = vmatpush.bf16.msra.mxu0 %v2436
        %2460 = vmatmul.bf16.gmra.mxu0 %v2383
        %v2461 = vpop.f32.mrf.mxu0
        %v2462 = vadd.f32 %v2402, %v2461
        %v2463 = vpop.f32.mrf.mxu0
        %2464 = vdwg.mxu0
        %v2465 = vadd.f32 %v2344, %v2462
        %v2466 = vsel %vm706, %v2465, 0.0
        %2467 = vadd.xlane.f32.xlu0 %v2466
        %v2468 = vpop.xlane.xlu0 %2467
        %v2469 = vmul.f32 %v2468, %v1478
        %v2470 = vsub.f32 %v2465, %v2469
        %v2471 = vmul.f32 %v2470, %v2470
        %v2472 = vsel %vm706, %v2471, 0.0
        %2473 = vadd.xlane.f32.xlu0 %v2472
        %v2474 = vpop.xlane.xlu0 %2473
        %v2475 = vmul.f32 %v2474, %v1478
        %v2476 = vadd.f32 %v2475, 1e-05
        %v2477 = vrsqrt.pop %v2476
        %v2478 = vmul.f32 %v2477, %v2476
        %v2479 = vmul.f32 %v2478, %v2477
        %v2480 = vmul.f32 0.5, %v2479
        %v2481 = vsub.f32 1.5, %v2480
        %v2482 = vmul.f32 %v2477, %v2481
        %vm2483 = vweird.f32 %v2476
        %vm2484 = vweird.f32 %v2477
        %vm2485 = vmor %vm2483, %vm2484
        %v2486 = vsel %vm2485, %v2477, %v2482
        %v2487 = vmul.f32 %v2470, %v2486
        %v2488 = vld [vmem:[%s16] sm:$0x1]
        %v2490 = vperm.slane %v2488, 0
        %v2492 = vmul.f32 %v2487, %v2490
        %v2493 = vld [vmem:[%s17] sm:$0x1]
        %v2495 = vperm.slane %v2493, 0
        %v2497 = vadd.f32 %v2492, %v2495
        %2498 = vst.msk [vmem:[%s668] sm:$0xff] %vm706, %v2497
        %s2499 = sand.u32 %s438, 1
        %s2500 = scalar_lea.sflag [#allocation4], %s2499
        %s2501 = sand.u32 %s438, 1
        %s2502 = smul.addr %s2501, 8
        %s2503 = scalar_lea.vmem [#allocation10], %s2502
        // Predicated region
        $region109: #{tpu_custom_call.1} parent=91 // pred_check
          %p2504 = pneg %p448
        $region110: #{tpu_custom_call.1} parent=91 // pred_check_branch
          %2506 = sbr.rel (%p2504) target = $region112
        $region111: #{tpu_custom_call.1} parent=91 // pred_region
          %2508 = vsyncadd %s2500, 0
          %s2509 = smul.addr %s37, 8
          %s2510 = scalar_lea.hbm %s18, %s2509
          %s2512 = sshll.u32 %s2503, 4
          %s2513 = int_to_ptr.vmem [resolvable:$true] %s2512
          %s2514 = sshll.u32 %s2510, 4
          %s2515 = int_to_ptr.hbm [resolvable:$true] %s2514
          %2517 = dma.vmem_to_hbm [thread:$0]  %s2513, 128, %s2515, %s2500
        $region112: #{tpu_custom_call.1} parent=91 // pred_fallthru
          _
      $region92: #{tpu_custom_call.1} parent=5 // pred_fallthru
        _
      %p2518 = scmp.le.s32.totalorder 2, %s32
      // Predicated region
      $region113: #{tpu_custom_call.1} parent=5 // pred_check
        %p2519 = pneg %p2518
      $region114: #{tpu_custom_call.1} parent=5 // pred_check_branch
        %2521 = sbr.rel (%p2519) target = $region116
      $region115: #{tpu_custom_call.1} parent=5 // pred_region
        %s2522 = ssub.s32 %s32, 2
        // Predicated region
        $region117: #{tpu_custom_call.1} parent=115 // pred_check
          %p2523 = pneg %p454
        $region118: #{tpu_custom_call.1} parent=115 // pred_check_branch
          %2525 = sbr.rel (%p2523) target = $region120
        $region119: #{tpu_custom_call.1} parent=115 // pred_region
          %s2526 = sand.u32 %s439, 1
          %s2527 = scalar_lea.sflag [#allocation4], %s2526
          %s2528 = sand.u32 %s439, 1
          %s2529 = smul.addr %s2528, 8
          %s2530 = scalar_lea.vmem [#allocation10], %s2529
          %2532 = dma.done %s2527, 128
        $region120: #{tpu_custom_call.1} parent=115 // pred_fallthru
          _
      $region116: #{tpu_custom_call.1} parent=5 // pred_fallthru
        _
    $region6: #{tpu_custom_call.1} parent=1 // loop_footer
      %s36 = sadd.s32 1, %s32
    $region7: #{tpu_custom_call.1} parent=1 // loop_footer_branch
      %31 = sbr.rel target = $region3
    $region8: #{tpu_custom_call.1} parent=1 // loop_exit
      _
    %2533 = vsyncpa [#allocation3], 1
    %s2534 = scalar_lea.sflag [#allocation3], 1
    %2535 = vsyncpa %s2534, 1
    %2536 = vsyncpa [#allocation6], 1
    %2537 = vsyncpa [#allocation9], 1
    %2538 = vsyncpa [#allocation4], 1
    %s2539 = scalar_lea.sflag [#allocation4], 1
    %2540 = vsyncpa %s2539, 1

</llo_original>
